<compile_context>
chip_gen: v7x
topology: tpu7x:2x2x1
jax: 0.10.0
libtpu: 0.0.40
codegen_flags: <defaults>
</compile_context>

<pallas_src>
import functools
import math

import jax
import jax.numpy as jnp
from jax.experimental import pallas as pl
from jax.experimental.pallas import tpu as pltpu


# ---------------------------------------------------------------------------
# Primary kernel: fused im2col + 3x3 / stride-2 conv (+ bias) for one
# (batch, output-row-tile) grid step.  The nine taps are pulled straight out
# of the VMEM-resident padded image with stride-2 slices.
# ---------------------------------------------------------------------------
def _down_conv_kernel_strided(x_ref, w_ref, b_ref, o_ref, *, tile_ho):
    """
    x_ref: (Hp, Wp, C)        bf16  zero(+edge)-padded image (resident per batch)
    w_ref: (9, C, Co)         bf16  tap-major conv weight, k = 3*ky + kx
    b_ref: (1, Co)            f32
    o_ref: (tile_ho*Wo, Co)   f32   output rows [r*tile_ho, (r+1)*tile_ho)
    """
    _, wp, c = x_ref.shape
    wo = wp // 2 - 1
    co = o_ref.shape[-1]
    m = tile_ho * wo

    r = pl.program_id(1)
    row0 = pl.multiple_of(2 * tile_ho * r, 2)

    acc = jnp.zeros((m, co), jnp.float32)
    for ky in range(3):
        for kx in range(3):
            # tap[i, j, :] = P[row0 + 2*i + ky, 2*j + kx, :]
            tap = x_ref[pl.ds(row0 + ky, tile_ho, 2), pl.ds(kx, wo, 2), :]
            acc = acc + jnp.dot(tap.reshape(m, c), w_ref[3 * ky + kx],
                                preferred_element_type=jnp.float32)
    o_ref[...] = (acc + b_ref[...]).astype(o_ref.dtype)


# ---------------------------------------------------------------------------
# Fallback kernel (known-good v2 path): contiguous-slice taps from a
# pair-packed image (B*Hq, 2, Wq, 2C).  Only used if the strided path is
# rejected by the installed Mosaic lowering.
# ---------------------------------------------------------------------------
def _down_conv_kernel_packed(x_ref, w_ref, b_ref, o_ref):
    hq, _, wq, c2 = x_ref.shape
    c = c2 // 2
    ho, wo = hq - 1, wq - 1
    co = o_ref.shape[-1]

    acc = jnp.zeros((ho * wo, co), jnp.float32)
    for ky in range(3):
        rp, rs = ky // 2, ky % 2
        for kx in range(3):
            cp, cs = kx // 2, kx % 2
            tap = x_ref[rp:rp + ho, rs, cp:cp + wo, cs * c:(cs + 1) * c]
            acc = acc + jnp.dot(tap.reshape(ho * wo, c), w_ref[3 * ky + kx],
                                preferred_element_type=jnp.float32)
    o_ref[0] = (acc + b_ref[...]).astype(o_ref.dtype)


# ---------------------------------------------------------------------------
# Helpers
# ---------------------------------------------------------------------------
def _pick_tile_ho(ho, wo):
    """Largest row tile that divides Ho, keeps the GEMM M dim modest, keeps the
    output block sublane-aligned, and leaves >= 2 row tiles (pipeline depth /
    megacore utilisation for small batches)."""
    for t in range(ho, 0, -1):
        if ho % t:
            continue
        if ho // t >= 2 and t * wo <= 2048 and (t * wo) % 8 == 0:
            return t
    return ho


def _vmem_limit_bytes():
    cap = 64 * 1024 * 1024
    try:
        cap = int(pltpu.get_tpu_info().vmem_capacity_bytes)
    except Exception:
        pass
    # ~12.5% headroom for compiler temporaries, capped at 100 MiB.
    return int(max(32 * 1024 * 1024, min(cap - cap // 8, 100 * 1024 * 1024)))


def _run_strided(xp, w, b2, *, B, C, Hp, Wp, Ho, Wo, tile_ho, Co_k, vmem_limit,
                 single_buffer_weights):
    n_row_tiles = Ho // tile_ho
    kernel = functools.partial(_down_conv_kernel_strided, tile_ho=tile_ho)

    w_kwargs = {}
    if single_buffer_weights:
        # Grid-invariant operands: single-buffer so C=Co=1280 weights (~30 MB
        # bf16) do not double-buffer on v7x's 64 MiB VMEM.
        w_kwargs = dict(pipeline_mode=pl.Buffered(1))

    grid_spec = pltpu.PrefetchScalarGridSpec(
        num_scalar_prefetch=0,
        grid=(B, n_row_tiles),
        in_specs=[
            pl.BlockSpec((None, Hp, Wp, C), lambda b, r: (b, 0, 0, 0)),
            pl.BlockSpec((9, C, Co_k), lambda b, r: (0, 0, 0), **w_kwargs),
            pl.BlockSpec((1, Co_k), lambda b, r: (0, 0), **w_kwargs),
        ],
        out_specs=pl.BlockSpec((None, tile_ho * Wo, Co_k), lambda b, r: (b, r, 0)),
    )
    return pl.pallas_call(
        kernel,
        out_shape=jax.ShapeDtypeStruct((B, Ho * Wo, Co_k), jnp.float32),
        grid_spec=grid_spec,
        compiler_params=pltpu.CompilerParams(
            dimension_semantics=("parallel", "parallel"),
            vmem_limit_bytes=vmem_limit,
        ),
    )(xp, w, b2)


def _run_packed(xp, w, b2, *, B, C, Ho, Wo, Co_k, vmem_limit):
    hq, wq = Ho + 1, Wo + 1
    xr = xp.reshape(B, hq, 2, wq, 2 * C).reshape(B * hq, 2, wq, 2 * C)
    return pl.pallas_call(
        _down_conv_kernel_packed,
        out_shape=jax.ShapeDtypeStruct((B, Ho * Wo, Co_k), jnp.float32),
        grid_spec=pltpu.PrefetchScalarGridSpec(
            num_scalar_prefetch=0,
            grid=(B,),
            in_specs=[
                pl.BlockSpec((hq, 2, wq, 2 * C), lambda b: (b, 0, 0, 0)),
                pl.BlockSpec((9, C, Co_k), lambda b: (0, 0, 0)),
                pl.BlockSpec((1, Co_k), lambda b: (0, 0)),
            ],
            out_specs=pl.BlockSpec((1, Ho * Wo, Co_k), lambda b: (b, 0, 0)),
        ),
        compiler_params=pltpu.CompilerParams(
            dimension_semantics=("parallel",),
            vmem_limit_bytes=vmem_limit,
        ),
    )(xr, w, b2)


# ---------------------------------------------------------------------------
# Downsample forward (use_conv=True, dims=2)
# ---------------------------------------------------------------------------
def downsample_forward(x_nchw, weight_oihw, bias, *, compute_dtype=jnp.bfloat16):
    """
    x_nchw:      (B, C, H, W) float32
    weight_oihw: (C_out, C, 3, 3) float32   (PyTorch Conv2d layout)
    bias:        (C_out,) float32
    returns:     (B, C_out, ceil(H/2), ceil(W/2)) float32
    """
    B, C, H, W = map(int, x_nchw.shape)
    Co = int(weight_oihw.shape[0])

    pad_h, pad_w = -H % 2, -W % 2
    He, We = H + pad_h, W + pad_w
    Ho, Wo = He // 2, We // 2
    Hp, Wp = He + 2, We + 2

    # --- wrapper passes (kept minimal; bf16 cast BEFORE the pads halves pad
    #     bytes and the transpose/convert/pad chain can fuse into one fusion) ---
    x = jnp.transpose(x_nchw, (0, 2, 3, 1)).astype(compute_dtype)     # NCHW -> NHWC
    if pad_h or pad_w:
        x = jnp.pad(x, ((0, 0), (0, pad_h), (0, pad_w), (0, 0)), mode="edge")
    xp = jnp.pad(x, ((0, 0), (1, 1), (1, 1), (0, 0)))                 # conv zero pad

    # --- weights: OIHW -> (9, C, Co) tap-major; pad Co to >=128 lanes for tiny
    #     configs so output stores are lane-dense ---
    Co_k = Co if Co >= 128 else 128
    w = jnp.transpose(weight_oihw, (2, 3, 1, 0)).reshape(9, C, Co).astype(compute_dtype)
    b2 = bias.reshape(1, Co).astype(jnp.float32)
    if Co_k != Co:
        w = jnp.pad(w, ((0, 0), (0, 0), (0, Co_k - Co)))
        b2 = jnp.pad(b2, ((0, 0), (0, Co_k - Co)))

    tile_ho = _pick_tile_ho(Ho, Wo)
    vmem_limit = _vmem_limit_bytes()

    out, last_err = None, None
    # Primary: strided-tap kernel with single-buffered weights.  Fallbacks only
    # exist for robustness across Mosaic lowerings; they run identical math.
    for attempt in ("strided_single_buffer", "strided", "packed"):
        try:
            if attempt == "packed":
                res = _run_packed(xp, w, b2, B=B, C=C, Ho=Ho, Wo=Wo, Co_k=Co_k,
                                  vmem_limit=vmem_limit)
            else:
                res = _run_strided(
                    xp, w, b2, B=B, C=C, Hp=Hp, Wp=Wp, Ho=Ho, Wo=Wo,
                    tile_ho=tile_ho, Co_k=Co_k, vmem_limit=vmem_limit,
                    single_buffer_weights=(attempt == "strided_single_buffer"))
            out = jax.block_until_ready(res)
            break
        except Exception as e:  # version-dependent lowering paths
            last_err, out = e, None
    if out is None:
        raise last_err

    # --- glue back to NCHW ---
    if Co_k != Co:
        out = out[..., :Co]
    out = out.reshape(B, Ho, Wo, Co)
    return jnp.transpose(out, (0, 3, 1, 2)).astype(x_nchw.dtype)


# ---------------------------------------------------------------------------
# Reference (plain JAX/XLA conv) for correctness checking
# ---------------------------------------------------------------------------
def downsample_reference(x_nchw, weight_oihw, bias):
    B, C, H, W = x_nchw.shape
    pad_h, pad_w = -H % 2, -W % 2
    x = jnp.pad(x_nchw, ((0, 0), (0, 0), (0, pad_h), (0, pad_w)), mode="edge")
    y = jax.lax.conv_general_dilated(
        x, weight_oihw,
        window_strides=(2, 2),
        padding=((1, 1), (1, 1)),
        dimension_numbers=("NCHW", "OIHW", "NCHW"),
        precision=jax.lax.Precision.HIGHEST,
    )
    return y + bias.reshape(1, -1, 1, 1)


if __name__ == "__main__":
    # Module config: channels=4, use_conv=True, dims=2, out_channels=6, padding=1
    channels, out_channels = 4, 6

    key = jax.random.PRNGKey(0)
    kx, kw, kb = jax.random.split(key, 3)

    fan_in = channels * 3 * 3
    bound = 1.0 / math.sqrt(fan_in)
    weight = jax.random.uniform(kw, (out_channels, channels, 3, 3),
                                minval=-bound, maxval=bound, dtype=jnp.float32)
    bias = jax.random.uniform(kb, (out_channels,),
                              minval=-bound, maxval=bound, dtype=jnp.float32)

    # (2,4,16,16): even spatial; (2,4,15,15): exercises the replicate-pad branch.
    for (B, H, W) in [(2, 16, 16), (2, 15, 15)]:
        x = jax.random.normal(jax.random.fold_in(kx, H * 100 + W),
                              (B, channels, H, W), dtype=jnp.float32)

        out = jax.block_until_ready(downsample_forward(x, weight, bias))

        # Reference on bf16-rounded inputs (the kernel feeds the MXU bf16
        # operands with f32 accumulation), so the only remaining difference is
        # accumulation order -> ~1e-6.
        x_q = x.astype(jnp.bfloat16).astype(jnp.float32)
        w_q = weight.astype(jnp.bfloat16).astype(jnp.float32)
        ref = jax.block_until_ready(downsample_reference(x_q, w_q, bias))

        assert out.shape == ref.shape, (out.shape, ref.shape)
        err = float(jnp.max(jnp.abs(out - ref)))
        assert jnp.allclose(out, ref, atol=1e-3, rtol=1e-3), err

    print("KERNEL_OK")
</pallas_src>

<mosaic_0001>
module attributes {stable_mosaic.version = 11 : i64} {
  func.func @_down_conv_kernel_strided(%arg0: i32, %arg1: i32, %arg2: memref<1x18x18x4xbf16, #tpu.memory_space<vmem>>, %arg3: memref<9x4x128xbf16, #tpu.memory_space<vmem>>, %arg4: memref<1x128xf32, #tpu.memory_space<vmem>>, %arg5: memref<1x32x128xf32, #tpu.memory_space<vmem>>) attributes {dimension_semantics = [#tpu.dimension_semantics<parallel>, #tpu.dimension_semantics<parallel>], iteration_bounds = array<i64: 2, 2>, scalar_prefetch = 0 : i64, scratch_operands = 0 : i64, tpu.core_type = #tpu.core_type<tc>, window_params = [{transform_indices = @transform_0, window_bounds = array<i64: 1, 18, 18, 4>}, {pipeline_mode = #tpu.pipeline_mode<synchronous>, transform_indices = @transform_1, window_bounds = array<i64: 9, 4, 128>}, {pipeline_mode = #tpu.pipeline_mode<synchronous>, transform_indices = @transform_2, window_bounds = array<i64: 1, 128>}, {transform_indices = @transform_3, window_bounds = array<i64: 1, 32, 128>}]} {
    %c8_i32 = arith.constant 8 : i32
    %0 = arith.muli %c8_i32, %arg1 : i32
    %1 = tpu.assume_multiple %0, 2 : i32
    %cst = arith.constant 0.000000e+00 : f32
    %2 = vector.broadcast %cst : f32 to vector<32x128xf32>
    %c0_i32 = arith.constant 0 : i32
    %3 = arith.addi %1, %c0_i32 : i32
    %c0 = arith.constant 0 : index
    %4 = arith.index_cast %3 : i32 to index
    %c0_0 = arith.constant 0 : index
    %c0_1 = arith.constant 0 : index
    %5 = tpu.strided_load %arg2[%c0, %4, %c0_0, %c0_1] {strides = array<i32: 1, 2, 2, 1>} : memref<1x18x18x4xbf16, #tpu.memory_space<vmem>>, vector<1x4x8x4xbf16>
    %6 = vector.shape_cast %5 : vector<1x4x8x4xbf16> to vector<4x8x4xbf16>
    %7 = vector.shape_cast %6 : vector<4x8x4xbf16> to vector<32x4xbf16>
    %c0_2 = arith.constant 0 : index
    %c0_3 = arith.constant 0 : index
    %c0_4 = arith.constant 0 : index
    %8 = vector.load %arg3[%c0_2, %c0_3, %c0_4] : memref<9x4x128xbf16, #tpu.memory_space<vmem>>, vector<1x4x128xbf16>
    %9 = vector.shape_cast %8 : vector<1x4x128xbf16> to vector<4x128xbf16>
    %cst_5 = arith.constant dense<0.000000e+00> : vector<32x128xf32>
    %10 = tpu.matmul %7, %9, %cst_5 {dimension_numbers = #tpu.dot_dimension_numbers<[1], [0], [0], [1], [0, 0, 1, 1], [], []>} : vector<32x4xbf16>, vector<4x128xbf16>, vector<32x128xf32> -> vector<32x128xf32>
    %11 = arith.addf %2, %10 : vector<32x128xf32>
    %c0_i32_6 = arith.constant 0 : i32
    %12 = arith.addi %1, %c0_i32_6 : i32
    %c0_7 = arith.constant 0 : index
    %13 = arith.index_cast %12 : i32 to index
    %c1 = arith.constant 1 : index
    %c0_8 = arith.constant 0 : index
    %14 = tpu.strided_load %arg2[%c0_7, %13, %c1, %c0_8] {strides = array<i32: 1, 2, 2, 1>} : memref<1x18x18x4xbf16, #tpu.memory_space<vmem>>, vector<1x4x8x4xbf16>
    %15 = vector.shape_cast %14 : vector<1x4x8x4xbf16> to vector<4x8x4xbf16>
    %16 = vector.shape_cast %15 : vector<4x8x4xbf16> to vector<32x4xbf16>
    %c1_9 = arith.constant 1 : index
    %c0_10 = arith.constant 0 : index
    %c0_11 = arith.constant 0 : index
    %17 = vector.load %arg3[%c1_9, %c0_10, %c0_11] : memref<9x4x128xbf16, #tpu.memory_space<vmem>>, vector<1x4x128xbf16>
    %18 = vector.shape_cast %17 : vector<1x4x128xbf16> to vector<4x128xbf16>
    %cst_12 = arith.constant dense<0.000000e+00> : vector<32x128xf32>
    %19 = tpu.matmul %16, %18, %cst_12 {dimension_numbers = #tpu.dot_dimension_numbers<[1], [0], [0], [1], [0, 0, 1, 1], [], []>} : vector<32x4xbf16>, vector<4x128xbf16>, vector<32x128xf32> -> vector<32x128xf32>
    %20 = arith.addf %11, %19 : vector<32x128xf32>
    %c0_i32_13 = arith.constant 0 : i32
    %21 = arith.addi %1, %c0_i32_13 : i32
    %c0_14 = arith.constant 0 : index
    %22 = arith.index_cast %21 : i32 to index
    %c2 = arith.constant 2 : index
    %c0_15 = arith.constant 0 : index
    %23 = tpu.strided_load %arg2[%c0_14, %22, %c2, %c0_15] {strides = array<i32: 1, 2, 2, 1>} : memref<1x18x18x4xbf16, #tpu.memory_space<vmem>>, vector<1x4x8x4xbf16>
    %24 = vector.shape_cast %23 : vector<1x4x8x4xbf16> to vector<4x8x4xbf16>
    %25 = vector.shape_cast %24 : vector<4x8x4xbf16> to vector<32x4xbf16>
    %c2_16 = arith.constant 2 : index
    %c0_17 = arith.constant 0 : index
    %c0_18 = arith.constant 0 : index
    %26 = vector.load %arg3[%c2_16, %c0_17, %c0_18] : memref<9x4x128xbf16, #tpu.memory_space<vmem>>, vector<1x4x128xbf16>
    %27 = vector.shape_cast %26 : vector<1x4x128xbf16> to vector<4x128xbf16>
    %cst_19 = arith.constant dense<0.000000e+00> : vector<32x128xf32>
    %28 = tpu.matmul %25, %27, %cst_19 {dimension_numbers = #tpu.dot_dimension_numbers<[1], [0], [0], [1], [0, 0, 1, 1], [], []>} : vector<32x4xbf16>, vector<4x128xbf16>, vector<32x128xf32> -> vector<32x128xf32>
    %29 = arith.addf %20, %28 : vector<32x128xf32>
    %c1_i32 = arith.constant 1 : i32
    %30 = arith.addi %1, %c1_i32 : i32
    %c0_20 = arith.constant 0 : index
    %31 = arith.index_cast %30 : i32 to index
    %c0_21 = arith.constant 0 : index
    %c0_22 = arith.constant 0 : index
    %32 = tpu.strided_load %arg2[%c0_20, %31, %c0_21, %c0_22] {strides = array<i32: 1, 2, 2, 1>} : memref<1x18x18x4xbf16, #tpu.memory_space<vmem>>, vector<1x4x8x4xbf16>
    %33 = vector.shape_cast %32 : vector<1x4x8x4xbf16> to vector<4x8x4xbf16>
    %34 = vector.shape_cast %33 : vector<4x8x4xbf16> to vector<32x4xbf16>
    %c3 = arith.constant 3 : index
    %c0_23 = arith.constant 0 : index
    %c0_24 = arith.constant 0 : index
    %35 = vector.load %arg3[%c3, %c0_23, %c0_24] : memref<9x4x128xbf16, #tpu.memory_space<vmem>>, vector<1x4x128xbf16>
    %36 = vector.shape_cast %35 : vector<1x4x128xbf16> to vector<4x128xbf16>
    %cst_25 = arith.constant dense<0.000000e+00> : vector<32x128xf32>
    %37 = tpu.matmul %34, %36, %cst_25 {dimension_numbers = #tpu.dot_dimension_numbers<[1], [0], [0], [1], [0, 0, 1, 1], [], []>} : vector<32x4xbf16>, vector<4x128xbf16>, vector<32x128xf32> -> vector<32x128xf32>
    %38 = arith.addf %29, %37 : vector<32x128xf32>
    %c1_i32_26 = arith.constant 1 : i32
    %39 = arith.addi %1, %c1_i32_26 : i32
    %c0_27 = arith.constant 0 : index
    %40 = arith.index_cast %39 : i32 to index
    %c1_28 = arith.constant 1 : index
    %c0_29 = arith.constant 0 : index
    %41 = tpu.strided_load %arg2[%c0_27, %40, %c1_28, %c0_29] {strides = array<i32: 1, 2, 2, 1>} : memref<1x18x18x4xbf16, #tpu.memory_space<vmem>>, vector<1x4x8x4xbf16>
    %42 = vector.shape_cast %41 : vector<1x4x8x4xbf16> to vector<4x8x4xbf16>
    %43 = vector.shape_cast %42 : vector<4x8x4xbf16> to vector<32x4xbf16>
    %c4 = arith.constant 4 : index
    %c0_30 = arith.constant 0 : index
    %c0_31 = arith.constant 0 : index
    %44 = vector.load %arg3[%c4, %c0_30, %c0_31] : memref<9x4x128xbf16, #tpu.memory_space<vmem>>, vector<1x4x128xbf16>
    %45 = vector.shape_cast %44 : vector<1x4x128xbf16> to vector<4x128xbf16>
    %cst_32 = arith.constant dense<0.000000e+00> : vector<32x128xf32>
    %46 = tpu.matmul %43, %45, %cst_32 {dimension_numbers = #tpu.dot_dimension_numbers<[1], [0], [0], [1], [0, 0, 1, 1], [], []>} : vector<32x4xbf16>, vector<4x128xbf16>, vector<32x128xf32> -> vector<32x128xf32>
    %47 = arith.addf %38, %46 : vector<32x128xf32>
    %c1_i32_33 = arith.constant 1 : i32
    %48 = arith.addi %1, %c1_i32_33 : i32
    %c0_34 = arith.constant 0 : index
    %49 = arith.index_cast %48 : i32 to index
    %c2_35 = arith.constant 2 : index
    %c0_36 = arith.constant 0 : index
    %50 = tpu.strided_load %arg2[%c0_34, %49, %c2_35, %c0_36] {strides = array<i32: 1, 2, 2, 1>} : memref<1x18x18x4xbf16, #tpu.memory_space<vmem>>, vector<1x4x8x4xbf16>
    %51 = vector.shape_cast %50 : vector<1x4x8x4xbf16> to vector<4x8x4xbf16>
    %52 = vector.shape_cast %51 : vector<4x8x4xbf16> to vector<32x4xbf16>
    %c5 = arith.constant 5 : index
    %c0_37 = arith.constant 0 : index
    %c0_38 = arith.constant 0 : index
    %53 = vector.load %arg3[%c5, %c0_37, %c0_38] : memref<9x4x128xbf16, #tpu.memory_space<vmem>>, vector<1x4x128xbf16>
    %54 = vector.shape_cast %53 : vector<1x4x128xbf16> to vector<4x128xbf16>
    %cst_39 = arith.constant dense<0.000000e+00> : vector<32x128xf32>
    %55 = tpu.matmul %52, %54, %cst_39 {dimension_numbers = #tpu.dot_dimension_numbers<[1], [0], [0], [1], [0, 0, 1, 1], [], []>} : vector<32x4xbf16>, vector<4x128xbf16>, vector<32x128xf32> -> vector<32x128xf32>
    %56 = arith.addf %47, %55 : vector<32x128xf32>
    %c2_i32 = arith.constant 2 : i32
    %57 = arith.addi %1, %c2_i32 : i32
    %c0_40 = arith.constant 0 : index
    %58 = arith.index_cast %57 : i32 to index
    %c0_41 = arith.constant 0 : index
    %c0_42 = arith.constant 0 : index
    %59 = tpu.strided_load %arg2[%c0_40, %58, %c0_41, %c0_42] {strides = array<i32: 1, 2, 2, 1>} : memref<1x18x18x4xbf16, #tpu.memory_space<vmem>>, vector<1x4x8x4xbf16>
    %60 = vector.shape_cast %59 : vector<1x4x8x4xbf16> to vector<4x8x4xbf16>
    %61 = vector.shape_cast %60 : vector<4x8x4xbf16> to vector<32x4xbf16>
    %c6 = arith.constant 6 : index
    %c0_43 = arith.constant 0 : index
    %c0_44 = arith.constant 0 : index
    %62 = vector.load %arg3[%c6, %c0_43, %c0_44] : memref<9x4x128xbf16, #tpu.memory_space<vmem>>, vector<1x4x128xbf16>
    %63 = vector.shape_cast %62 : vector<1x4x128xbf16> to vector<4x128xbf16>
    %cst_45 = arith.constant dense<0.000000e+00> : vector<32x128xf32>
    %64 = tpu.matmul %61, %63, %cst_45 {dimension_numbers = #tpu.dot_dimension_numbers<[1], [0], [0], [1], [0, 0, 1, 1], [], []>} : vector<32x4xbf16>, vector<4x128xbf16>, vector<32x128xf32> -> vector<32x128xf32>
    %65 = arith.addf %56, %64 : vector<32x128xf32>
    %c2_i32_46 = arith.constant 2 : i32
    %66 = arith.addi %1, %c2_i32_46 : i32
    %c0_47 = arith.constant 0 : index
    %67 = arith.index_cast %66 : i32 to index
    %c1_48 = arith.constant 1 : index
    %c0_49 = arith.constant 0 : index
    %68 = tpu.strided_load %arg2[%c0_47, %67, %c1_48, %c0_49] {strides = array<i32: 1, 2, 2, 1>} : memref<1x18x18x4xbf16, #tpu.memory_space<vmem>>, vector<1x4x8x4xbf16>
    %69 = vector.shape_cast %68 : vector<1x4x8x4xbf16> to vector<4x8x4xbf16>
    %70 = vector.shape_cast %69 : vector<4x8x4xbf16> to vector<32x4xbf16>
    %c7 = arith.constant 7 : index
    %c0_50 = arith.constant 0 : index
    %c0_51 = arith.constant 0 : index
    %71 = vector.load %arg3[%c7, %c0_50, %c0_51] : memref<9x4x128xbf16, #tpu.memory_space<vmem>>, vector<1x4x128xbf16>
    %72 = vector.shape_cast %71 : vector<1x4x128xbf16> to vector<4x128xbf16>
    %cst_52 = arith.constant dense<0.000000e+00> : vector<32x128xf32>
    %73 = tpu.matmul %70, %72, %cst_52 {dimension_numbers = #tpu.dot_dimension_numbers<[1], [0], [0], [1], [0, 0, 1, 1], [], []>} : vector<32x4xbf16>, vector<4x128xbf16>, vector<32x128xf32> -> vector<32x128xf32>
    %74 = arith.addf %65, %73 : vector<32x128xf32>
    %c2_i32_53 = arith.constant 2 : i32
    %75 = arith.addi %1, %c2_i32_53 : i32
    %c0_54 = arith.constant 0 : index
    %76 = arith.index_cast %75 : i32 to index
    %c2_55 = arith.constant 2 : index
    %c0_56 = arith.constant 0 : index
    %77 = tpu.strided_load %arg2[%c0_54, %76, %c2_55, %c0_56] {strides = array<i32: 1, 2, 2, 1>} : memref<1x18x18x4xbf16, #tpu.memory_space<vmem>>, vector<1x4x8x4xbf16>
    %78 = vector.shape_cast %77 : vector<1x4x8x4xbf16> to vector<4x8x4xbf16>
    %79 = vector.shape_cast %78 : vector<4x8x4xbf16> to vector<32x4xbf16>
    %c8 = arith.constant 8 : index
    %c0_57 = arith.constant 0 : index
    %c0_58 = arith.constant 0 : index
    %80 = vector.load %arg3[%c8, %c0_57, %c0_58] : memref<9x4x128xbf16, #tpu.memory_space<vmem>>, vector<1x4x128xbf16>
    %81 = vector.shape_cast %80 : vector<1x4x128xbf16> to vector<4x128xbf16>
    %cst_59 = arith.constant dense<0.000000e+00> : vector<32x128xf32>
    %82 = tpu.matmul %79, %81, %cst_59 {dimension_numbers = #tpu.dot_dimension_numbers<[1], [0], [0], [1], [0, 0, 1, 1], [], []>} : vector<32x4xbf16>, vector<4x128xbf16>, vector<32x128xf32> -> vector<32x128xf32>
    %83 = arith.addf %74, %82 : vector<32x128xf32>
    %c0_60 = arith.constant 0 : index
    %c0_61 = arith.constant 0 : index
    %84 = vector.load %arg4[%c0_60, %c0_61] : memref<1x128xf32, #tpu.memory_space<vmem>>, vector<1x128xf32>
    %85 = vector.broadcast %84 : vector<1x128xf32> to vector<32x128xf32>
    %86 = arith.addf %83, %85 : vector<32x128xf32>
    %c0_62 = arith.constant 0 : index
    %c0_63 = arith.constant 0 : index
    %c0_64 = arith.constant 0 : index
    %87 = vector.load %arg5[%c0_62, %c0_63, %c0_64] : memref<1x32x128xf32, #tpu.memory_space<vmem>>, vector<1x32x128xf32>
    %88 = vector.shape_cast %87 : vector<1x32x128xf32> to vector<32x128xf32>
    %89 = vector.shape_cast %86 : vector<32x128xf32> to vector<1x32x128xf32>
    tpu.vector_store %arg5[%c0_62, %c0_63, %c0_64], %89 {strides = array<i32>} : memref<1x32x128xf32, #tpu.memory_space<vmem>>, vector<1x32x128xf32>,
    return
  }
  func.func @transform_0(%arg0: i32, %arg1: i32) -> (i32, i32, i32, i32) {
    %c0_i32 = arith.constant 0 : i32
    %c0_i32_0 = arith.constant 0 : i32
    %c0_i32_1 = arith.constant 0 : i32
    %c0_i32_2 = arith.constant 0 : i32
    return %arg0, %c0_i32, %c0_i32_0, %c0_i32_1 : i32, i32, i32, i32
  }
  func.func @transform_1(%arg0: i32, %arg1: i32) -> (i32, i32, i32) {
    %c0_i32 = arith.constant 0 : i32
    %c0_i32_0 = arith.constant 0 : i32
    %c0_i32_1 = arith.constant 0 : i32
    %c0_i32_2 = arith.constant 0 : i32
    return %c0_i32, %c0_i32_0, %c0_i32_1 : i32, i32, i32
  }
  func.func @transform_2(%arg0: i32, %arg1: i32) -> (i32, i32) {
    %c0_i32 = arith.constant 0 : i32
    %c0_i32_0 = arith.constant 0 : i32
    %c0_i32_1 = arith.constant 0 : i32
    return %c0_i32, %c0_i32_0 : i32, i32
  }
  func.func @transform_3(%arg0: i32, %arg1: i32) -> (i32, i32, i32) {
    %c0_i32 = arith.constant 0 : i32
    %c0_i32_0 = arith.constant 0 : i32
    return %arg0, %arg1, %c0_i32 : i32, i32, i32
  }
}

module attributes {stable_mosaic.version = 11 : i64} {
  func.func @_down_conv_kernel_strided(%arg0: i32, %arg1: i32, %arg2: memref<1x18x18x4xbf16, #tpu.memory_space<vmem>>, %arg3: memref<9x4x128xbf16, #tpu.memory_space<vmem>>, %arg4: memref<1x128xf32, #tpu.memory_space<vmem>>, %arg5: memref<1x32x128xf32, #tpu.memory_space<vmem>>) attributes {dimension_semantics = [#tpu.dimension_semantics<parallel>, #tpu.dimension_semantics<parallel>], iteration_bounds = array<i64: 2, 2>, scalar_prefetch = 0 : i64, scratch_operands = 0 : i64, tpu.core_type = #tpu.core_type<tc>, window_params = [{transform_indices = @transform_0, window_bounds = array<i64: 1, 18, 18, 4>}, {pipeline_mode = #tpu.pipeline_mode<synchronous>, transform_indices = @transform_1, window_bounds = array<i64: 9, 4, 128>}, {pipeline_mode = #tpu.pipeline_mode<synchronous>, transform_indices = @transform_2, window_bounds = array<i64: 1, 128>}, {transform_indices = @transform_3, window_bounds = array<i64: 1, 32, 128>}]} {
    %c8_i32 = arith.constant 8 : i32
    %0 = arith.muli %c8_i32, %arg1 : i32
    %1 = tpu.assume_multiple %0, 2 : i32
    %cst = arith.constant 0.000000e+00 : f32
    %2 = vector.broadcast %cst : f32 to vector<32x128xf32>
    %c0_i32 = arith.constant 0 : i32
    %3 = arith.addi %1, %c0_i32 : i32
    %c0 = arith.constant 0 : index
    %4 = arith.index_cast %3 : i32 to index
    %c0_0 = arith.constant 0 : index
    %c0_1 = arith.constant 0 : index
    %5 = tpu.strided_load %arg2[%c0, %4, %c0_0, %c0_1] {strides = array<i32: 1, 2, 2, 1>} : memref<1x18x18x4xbf16, #tpu.memory_space<vmem>>, vector<1x4x8x4xbf16>
    %6 = vector.shape_cast %5 : vector<1x4x8x4xbf16> to vector<4x8x4xbf16>
    %7 = vector.shape_cast %6 : vector<4x8x4xbf16> to vector<32x4xbf16>
    %c0_2 = arith.constant 0 : index
    %c0_3 = arith.constant 0 : index
    %c0_4 = arith.constant 0 : index
    %8 = vector.load %arg3[%c0_2, %c0_3, %c0_4] : memref<9x4x128xbf16, #tpu.memory_space<vmem>>, vector<1x4x128xbf16>
    %9 = vector.shape_cast %8 : vector<1x4x128xbf16> to vector<4x128xbf16>
    %cst_5 = arith.constant dense<0.000000e+00> : vector<32x128xf32>
    %10 = tpu.matmul %7, %9, %cst_5 {dimension_numbers = #tpu.dot_dimension_numbers<[1], [0], [0], [1], [0, 0, 1, 1], [], []>} : vector<32x4xbf16>, vector<4x128xbf16>, vector<32x128xf32> -> vector<32x128xf32>
    %11 = arith.addf %2, %10 : vector<32x128xf32>
    %c0_i32_6 = arith.constant 0 : i32
    %12 = arith.addi %1, %c0_i32_6 : i32
    %c0_7 = arith.constant 0 : index
    %13 = arith.index_cast %12 : i32 to index
    %c1 = arith.constant 1 : index
    %c0_8 = arith.constant 0 : index
    %14 = tpu.strided_load %arg2[%c0_7, %13, %c1, %c0_8] {strides = array<i32: 1, 2, 2, 1>} : memref<1x18x18x4xbf16, #tpu.memory_space<vmem>>, vector<1x4x8x4xbf16>
    %15 = vector.shape_cast %14 : vector<1x4x8x4xbf16> to vector<4x8x4xbf16>
    %16 = vector.shape_cast %15 : vector<4x8x4xbf16> to vector<32x4xbf16>
    %c1_9 = arith.constant 1 : index
    %c0_10 = arith.constant 0 : index
    %c0_11 = arith.constant 0 : index
    %17 = vector.load %arg3[%c1_9, %c0_10, %c0_11] : memref<9x4x128xbf16, #tpu.memory_space<vmem>>, vector<1x4x128xbf16>
    %18 = vector.shape_cast %17 : vector<1x4x128xbf16> to vector<4x128xbf16>
    %cst_12 = arith.constant dense<0.000000e+00> : vector<32x128xf32>
    %19 = tpu.matmul %16, %18, %cst_12 {dimension_numbers = #tpu.dot_dimension_numbers<[1], [0], [0], [1], [0, 0, 1, 1], [], []>} : vector<32x4xbf16>, vector<4x128xbf16>, vector<32x128xf32> -> vector<32x128xf32>
    %20 = arith.addf %11, %19 : vector<32x128xf32>
    %c0_i32_13 = arith.constant 0 : i32
    %21 = arith.addi %1, %c0_i32_13 : i32
    %c0_14 = arith.constant 0 : index
    %22 = arith.index_cast %21 : i32 to index
    %c2 = arith.constant 2 : index
    %c0_15 = arith.constant 0 : index
    %23 = tpu.strided_load %arg2[%c0_14, %22, %c2, %c0_15] {strides = array<i32: 1, 2, 2, 1>} : memref<1x18x18x4xbf16, #tpu.memory_space<vmem>>, vector<1x4x8x4xbf16>
    %24 = vector.shape_cast %23 : vector<1x4x8x4xbf16> to vector<4x8x4xbf16>
    %25 = vector.shape_cast %24 : vector<4x8x4xbf16> to vector<32x4xbf16>
    %c2_16 = arith.constant 2 : index
    %c0_17 = arith.constant 0 : index
    %c0_18 = arith.constant 0 : index
    %26 = vector.load %arg3[%c2_16, %c0_17, %c0_18] : memref<9x4x128xbf16, #tpu.memory_space<vmem>>, vector<1x4x128xbf16>
    %27 = vector.shape_cast %26 : vector<1x4x128xbf16> to vector<4x128xbf16>
    %cst_19 = arith.constant dense<0.000000e+00> : vector<32x128xf32>
    %28 = tpu.matmul %25, %27, %cst_19 {dimension_numbers = #tpu.dot_dimension_numbers<[1], [0], [0], [1], [0, 0, 1, 1], [], []>} : vector<32x4xbf16>, vector<4x128xbf16>, vector<32x128xf32> -> vector<32x128xf32>
    %29 = arith.addf %20, %28 : vector<32x128xf32>
    %c1_i32 = arith.constant 1 : i32
    %30 = arith.addi %1, %c1_i32 : i32
    %c0_20 = arith.constant 0 : index
    %31 = arith.index_cast %30 : i32 to index
    %c0_21 = arith.constant 0 : index
    %c0_22 = arith.constant 0 : index
    %32 = tpu.strided_load %arg2[%c0_20, %31, %c0_21, %c0_22] {strides = array<i32: 1, 2, 2, 1>} : memref<1x18x18x4xbf16, #tpu.memory_space<vmem>>, vector<1x4x8x4xbf16>
    %33 = vector.shape_cast %32 : vector<1x4x8x4xbf16> to vector<4x8x4xbf16>
    %34 = vector.shape_cast %33 : vector<4x8x4xbf16> to vector<32x4xbf16>
    %c3 = arith.constant 3 : index
    %c0_23 = arith.constant 0 : index
    %c0_24 = arith.constant 0 : index
    %35 = vector.load %arg3[%c3, %c0_23, %c0_24] : memref<9x4x128xbf16, #tpu.memory_space<vmem>>, vector<1x4x128xbf16>
    %36 = vector.shape_cast %35 : vector<1x4x128xbf16> to vector<4x128xbf16>
    %cst_25 = arith.constant dense<0.000000e+00> : vector<32x128xf32>
    %37 = tpu.matmul %34, %36, %cst_25 {dimension_numbers = #tpu.dot_dimension_numbers<[1], [0], [0], [1], [0, 0, 1, 1], [], []>} : vector<32x4xbf16>, vector<4x128xbf16>, vector<32x128xf32> -> vector<32x128xf32>
    %38 = arith.addf %29, %37 : vector<32x128xf32>
    %c1_i32_26 = arith.constant 1 : i32
    %39 = arith.addi %1, %c1_i32_26 : i32
    %c0_27 = arith.constant 0 : index
    %40 = arith.index_cast %39 : i32 to index
    %c1_28 = arith.constant 1 : index
    %c0_29 = arith.constant 0 : index
    %41 = tpu.strided_load %arg2[%c0_27, %40, %c1_28, %c0_29] {strides = array<i32: 1, 2, 2, 1>} : memref<1x18x18x4xbf16, #tpu.memory_space<vmem>>, vector<1x4x8x4xbf16>
    %42 = vector.shape_cast %41 : vector<1x4x8x4xbf16> to vector<4x8x4xbf16>
    %43 = vector.shape_cast %42 : vector<4x8x4xbf16> to vector<32x4xbf16>
    %c4 = arith.constant 4 : index
    %c0_30 = arith.constant 0 : index
    %c0_31 = arith.constant 0 : index
    %44 = vector.load %arg3[%c4, %c0_30, %c0_31] : memref<9x4x128xbf16, #tpu.memory_space<vmem>>, vector<1x4x128xbf16>
    %45 = vector.shape_cast %44 : vector<1x4x128xbf16> to vector<4x128xbf16>
    %cst_32 = arith.constant dense<0.000000e+00> : vector<32x128xf32>
    %46 = tpu.matmul %43, %45, %cst_32 {dimension_numbers = #tpu.dot_dimension_numbers<[1], [0], [0], [1], [0, 0, 1, 1], [], []>} : vector<32x4xbf16>, vector<4x128xbf16>, vector<32x128xf32> -> vector<32x128xf32>
    %47 = arith.addf %38, %46 : vector<32x128xf32>
    %c1_i32_33 = arith.constant 1 : i32
    %48 = arith.addi %1, %c1_i32_33 : i32
    %c0_34 = arith.constant 0 : index
    %49 = arith.index_cast %48 : i32 to index
    %c2_35 = arith.constant 2 : index
    %c0_36 = arith.constant 0 : index
    %50 = tpu.strided_load %arg2[%c0_34, %49, %c2_35, %c0_36] {strides = array<i32: 1, 2, 2, 1>} : memref<1x18x18x4xbf16, #tpu.memory_space<vmem>>, vector<1x4x8x4xbf16>
    %51 = vector.shape_cast %50 : vector<1x4x8x4xbf16> to vector<4x8x4xbf16>
    %52 = vector.shape_cast %51 : vector<4x8x4xbf16> to vector<32x4xbf16>
    %c5 = arith.constant 5 : index
    %c0_37 = arith.constant 0 : index
    %c0_38 = arith.constant 0 : index
    %53 = vector.load %arg3[%c5, %c0_37, %c0_38] : memref<9x4x128xbf16, #tpu.memory_space<vmem>>, vector<1x4x128xbf16>
    %54 = vector.shape_cast %53 : vector<1x4x128xbf16> to vector<4x128xbf16>
    %cst_39 = arith.constant dense<0.000000e+00> : vector<32x128xf32>
    %55 = tpu.matmul %52, %54, %cst_39 {dimension_numbers = #tpu.dot_dimension_numbers<[1], [0], [0], [1], [0, 0, 1, 1], [], []>} : vector<32x4xbf16>, vector<4x128xbf16>, vector<32x128xf32> -> vector<32x128xf32>
    %56 = arith.addf %47, %55 : vector<32x128xf32>
    %c2_i32 = arith.constant 2 : i32
    %57 = arith.addi %1, %c2_i32 : i32
    %c0_40 = arith.constant 0 : index
    %58 = arith.index_cast %57 : i32 to index
    %c0_41 = arith.constant 0 : index
    %c0_42 = arith.constant 0 : index
    %59 = tpu.strided_load %arg2[%c0_40, %58, %c0_41, %c0_42] {strides = array<i32: 1, 2, 2, 1>} : memref<1x18x18x4xbf16, #tpu.memory_space<vmem>>, vector<1x4x8x4xbf16>
    %60 = vector.shape_cast %59 : vector<1x4x8x4xbf16> to vector<4x8x4xbf16>
    %61 = vector.shape_cast %60 : vector<4x8x4xbf16> to vector<32x4xbf16>
    %c6 = arith.constant 6 : index
    %c0_43 = arith.constant 0 : index
    %c0_44 = arith.constant 0 : index
    %62 = vector.load %arg3[%c6, %c0_43, %c0_44] : memref<9x4x128xbf16, #tpu.memory_space<vmem>>, vector<1x4x128xbf16>
    %63 = vector.shape_cast %62 : vector<1x4x128xbf16> to vector<4x128xbf16>
    %cst_45 = arith.constant dense<0.000000e+00> : vector<32x128xf32>
    %64 = tpu.matmul %61, %63, %cst_45 {dimension_numbers = #tpu.dot_dimension_numbers<[1], [0], [0], [1], [0, 0, 1, 1], [], []>} : vector<32x4xbf16>, vector<4x128xbf16>, vector<32x128xf32> -> vector<32x128xf32>
    %65 = arith.addf %56, %64 : vector<32x128xf32>
    %c2_i32_46 = arith.constant 2 : i32
    %66 = arith.addi %1, %c2_i32_46 : i32
    %c0_47 = arith.constant 0 : index
    %67 = arith.index_cast %66 : i32 to index
    %c1_48 = arith.constant 1 : index
    %c0_49 = arith.constant 0 : index
    %68 = tpu.strided_load %arg2[%c0_47, %67, %c1_48, %c0_49] {strides = array<i32: 1, 2, 2, 1>} : memref<1x18x18x4xbf16, #tpu.memory_space<vmem>>, vector<1x4x8x4xbf16>
    %69 = vector.shape_cast %68 : vector<1x4x8x4xbf16> to vector<4x8x4xbf16>
    %70 = vector.shape_cast %69 : vector<4x8x4xbf16> to vector<32x4xbf16>
    %c7 = arith.constant 7 : index
    %c0_50 = arith.constant 0 : index
    %c0_51 = arith.constant 0 : index
    %71 = vector.load %arg3[%c7, %c0_50, %c0_51] : memref<9x4x128xbf16, #tpu.memory_space<vmem>>, vector<1x4x128xbf16>
    %72 = vector.shape_cast %71 : vector<1x4x128xbf16> to vector<4x128xbf16>
    %cst_52 = arith.constant dense<0.000000e+00> : vector<32x128xf32>
    %73 = tpu.matmul %70, %72, %cst_52 {dimension_numbers = #tpu.dot_dimension_numbers<[1], [0], [0], [1], [0, 0, 1, 1], [], []>} : vector<32x4xbf16>, vector<4x128xbf16>, vector<32x128xf32> -> vector<32x128xf32>
    %74 = arith.addf %65, %73 : vector<32x128xf32>
    %c2_i32_53 = arith.constant 2 : i32
    %75 = arith.addi %1, %c2_i32_53 : i32
    %c0_54 = arith.constant 0 : index
    %76 = arith.index_cast %75 : i32 to index
    %c2_55 = arith.constant 2 : index
    %c0_56 = arith.constant 0 : index
    %77 = tpu.strided_load %arg2[%c0_54, %76, %c2_55, %c0_56] {strides = array<i32: 1, 2, 2, 1>} : memref<1x18x18x4xbf16, #tpu.memory_space<vmem>>, vector<1x4x8x4xbf16>
    %78 = vector.shape_cast %77 : vector<1x4x8x4xbf16> to vector<4x8x4xbf16>
    %79 = vector.shape_cast %78 : vector<4x8x4xbf16> to vector<32x4xbf16>
    %c8 = arith.constant 8 : index
    %c0_57 = arith.constant 0 : index
    %c0_58 = arith.constant 0 : index
    %80 = vector.load %arg3[%c8, %c0_57, %c0_58] : memref<9x4x128xbf16, #tpu.memory_space<vmem>>, vector<1x4x128xbf16>
    %81 = vector.shape_cast %80 : vector<1x4x128xbf16> to vector<4x128xbf16>
    %cst_59 = arith.constant dense<0.000000e+00> : vector<32x128xf32>
    %82 = tpu.matmul %79, %81, %cst_59 {dimension_numbers = #tpu.dot_dimension_numbers<[1], [0], [0], [1], [0, 0, 1, 1], [], []>} : vector<32x4xbf16>, vector<4x128xbf16>, vector<32x128xf32> -> vector<32x128xf32>
    %83 = arith.addf %74, %82 : vector<32x128xf32>
    %c0_60 = arith.constant 0 : index
    %c0_61 = arith.constant 0 : index
    %84 = vector.load %arg4[%c0_60, %c0_61] : memref<1x128xf32, #tpu.memory_space<vmem>>, vector<1x128xf32>
    %85 = vector.broadcast %84 : vector<1x128xf32> to vector<32x128xf32>
    %86 = arith.addf %83, %85 : vector<32x128xf32>
    %c0_62 = arith.constant 0 : index
    %c0_63 = arith.constant 0 : index
    %c0_64 = arith.constant 0 : index
    %87 = vector.load %arg5[%c0_62, %c0_63, %c0_64] : memref<1x32x128xf32, #tpu.memory_space<vmem>>, vector<1x32x128xf32>
    %88 = vector.shape_cast %87 : vector<1x32x128xf32> to vector<32x128xf32>
    %89 = vector.shape_cast %86 : vector<32x128xf32> to vector<1x32x128xf32>
    tpu.vector_store %arg5[%c0_62, %c0_63, %c0_64], %89 {strides = array<i32>} : memref<1x32x128xf32, #tpu.memory_space<vmem>>, vector<1x32x128xf32>,
    return
  }
  func.func @transform_0(%arg0: i32, %arg1: i32) -> (i32, i32, i32, i32) {
    %c0_i32 = arith.constant 0 : i32
    %c0_i32_0 = arith.constant 0 : i32
    %c0_i32_1 = arith.constant 0 : i32
    %c0_i32_2 = arith.constant 0 : i32
    return %arg0, %c0_i32, %c0_i32_0, %c0_i32_1 : i32, i32, i32, i32
  }
  func.func @transform_1(%arg0: i32, %arg1: i32) -> (i32, i32, i32) {
    %c0_i32 = arith.constant 0 : i32
    %c0_i32_0 = arith.constant 0 : i32
    %c0_i32_1 = arith.constant 0 : i32
    %c0_i32_2 = arith.constant 0 : i32
    return %c0_i32, %c0_i32_0, %c0_i32_1 : i32, i32, i32
  }
  func.func @transform_2(%arg0: i32, %arg1: i32) -> (i32, i32) {
    %c0_i32 = arith.constant 0 : i32
    %c0_i32_0 = arith.constant 0 : i32
    %c0_i32_1 = arith.constant 0 : i32
    return %c0_i32, %c0_i32_0 : i32, i32
  }
  func.func @transform_3(%arg0: i32, %arg1: i32) -> (i32, i32, i32) {
    %c0_i32 = arith.constant 0 : i32
    %c0_i32_0 = arith.constant 0 : i32
    return %arg0, %arg1, %c0_i32 : i32, i32, i32
  }
}

module attributes {stable_mosaic.version = 11 : i64} {
  func.func @_down_conv_kernel_packed(%arg0: i32, %arg1: memref<9x2x9x8xbf16, #tpu.memory_space<vmem>>, %arg2: memref<9x4x128xbf16, #tpu.memory_space<vmem>>, %arg3: memref<1x128xf32, #tpu.memory_space<vmem>>, %arg4: memref<1x64x128xf32, #tpu.memory_space<vmem>>) attributes {dimension_semantics = [#tpu.dimension_semantics<parallel>], iteration_bounds = array<i64: 2>, scalar_prefetch = 0 : i64, scratch_operands = 0 : i64, tpu.core_type = #tpu.core_type<tc>, window_params = [{transform_indices = @transform_0, window_bounds = array<i64: 9, 2, 9, 8>}, {pipeline_mode = #tpu.pipeline_mode<synchronous>, transform_indices = @transform_1, window_bounds = array<i64: 9, 4, 128>}, {pipeline_mode = #tpu.pipeline_mode<synchronous>, transform_indices = @transform_2, window_bounds = array<i64: 1, 128>}, {transform_indices = @transform_3, window_bounds = array<i64: 1, 64, 128>}]} {
    %cst = arith.constant 0.000000e+00 : f32
    %0 = vector.broadcast %cst : f32 to vector<64x128xf32>
    %c0 = arith.constant 0 : index
    %c0_0 = arith.constant 0 : index
    %c0_1 = arith.constant 0 : index
    %c0_2 = arith.constant 0 : index
    %1 = vector.load %arg1[%c0, %c0_0, %c0_1, %c0_2] : memref<9x2x9x8xbf16, #tpu.memory_space<vmem>>, vector<8x1x8x4xbf16>
    %2 = vector.shape_cast %1 : vector<8x1x8x4xbf16> to vector<8x8x4xbf16>
    %3 = vector.shape_cast %2 : vector<8x8x4xbf16> to vector<64x4xbf16>
    %c0_3 = arith.constant 0 : index
    %c0_4 = arith.constant 0 : index
    %c0_5 = arith.constant 0 : index
    %4 = vector.load %arg2[%c0_3, %c0_4, %c0_5] : memref<9x4x128xbf16, #tpu.memory_space<vmem>>, vector<1x4x128xbf16>
    %5 = vector.shape_cast %4 : vector<1x4x128xbf16> to vector<4x128xbf16>
    %cst_6 = arith.constant dense<0.000000e+00> : vector<64x128xf32>
    %6 = tpu.matmul %3, %5, %cst_6 {dimension_numbers = #tpu.dot_dimension_numbers<[1], [0], [0], [1], [0, 0, 1, 1], [], []>} : vector<64x4xbf16>, vector<4x128xbf16>, vector<64x128xf32> -> vector<64x128xf32>
    %7 = arith.addf %0, %6 : vector<64x128xf32>
    %c0_7 = arith.constant 0 : index
    %c0_8 = arith.constant 0 : index
    %c0_9 = arith.constant 0 : index
    %c4 = arith.constant 4 : index
    %8 = vector.load %arg1[%c0_7, %c0_8, %c0_9, %c4] : memref<9x2x9x8xbf16, #tpu.memory_space<vmem>>, vector<8x1x8x4xbf16>
    %9 = vector.shape_cast %8 : vector<8x1x8x4xbf16> to vector<8x8x4xbf16>
    %10 = vector.shape_cast %9 : vector<8x8x4xbf16> to vector<64x4xbf16>
    %c1 = arith.constant 1 : index
    %c0_10 = arith.constant 0 : index
    %c0_11 = arith.constant 0 : index
    %11 = vector.load %arg2[%c1, %c0_10, %c0_11] : memref<9x4x128xbf16, #tpu.memory_space<vmem>>, vector<1x4x128xbf16>
    %12 = vector.shape_cast %11 : vector<1x4x128xbf16> to vector<4x128xbf16>
    %cst_12 = arith.constant dense<0.000000e+00> : vector<64x128xf32>
    %13 = tpu.matmul %10, %12, %cst_12 {dimension_numbers = #tpu.dot_dimension_numbers<[1], [0], [0], [1], [0, 0, 1, 1], [], []>} : vector<64x4xbf16>, vector<4x128xbf16>, vector<64x128xf32> -> vector<64x128xf32>
    %14 = arith.addf %7, %13 : vector<64x128xf32>
    %c0_13 = arith.constant 0 : index
    %c0_14 = arith.constant 0 : index
    %c1_15 = arith.constant 1 : index
    %c0_16 = arith.constant 0 : index
    %15 = vector.load %arg1[%c0_13, %c0_14, %c1_15, %c0_16] : memref<9x2x9x8xbf16, #tpu.memory_space<vmem>>, vector<8x1x8x4xbf16>
    %16 = vector.shape_cast %15 : vector<8x1x8x4xbf16> to vector<8x8x4xbf16>
    %17 = vector.shape_cast %16 : vector<8x8x4xbf16> to vector<64x4xbf16>
    %c2 = arith.constant 2 : index
    %c0_17 = arith.constant 0 : index
    %c0_18 = arith.constant 0 : index
    %18 = vector.load %arg2[%c2, %c0_17, %c0_18] : memref<9x4x128xbf16, #tpu.memory_space<vmem>>, vector<1x4x128xbf16>
    %19 = vector.shape_cast %18 : vector<1x4x128xbf16> to vector<4x128xbf16>
    %cst_19 = arith.constant dense<0.000000e+00> : vector<64x128xf32>
    %20 = tpu.matmul %17, %19, %cst_19 {dimension_numbers = #tpu.dot_dimension_numbers<[1], [0], [0], [1], [0, 0, 1, 1], [], []>} : vector<64x4xbf16>, vector<4x128xbf16>, vector<64x128xf32> -> vector<64x128xf32>
    %21 = arith.addf %14, %20 : vector<64x128xf32>
    %c0_20 = arith.constant 0 : index
    %c1_21 = arith.constant 1 : index
    %c0_22 = arith.constant 0 : index
    %c0_23 = arith.constant 0 : index
    %22 = vector.load %arg1[%c0_20, %c1_21, %c0_22, %c0_23] : memref<9x2x9x8xbf16, #tpu.memory_space<vmem>>, vector<8x1x8x4xbf16>
    %23 = vector.shape_cast %22 : vector<8x1x8x4xbf16> to vector<8x8x4xbf16>
    %24 = vector.shape_cast %23 : vector<8x8x4xbf16> to vector<64x4xbf16>
    %c3 = arith.constant 3 : index
    %c0_24 = arith.constant 0 : index
    %c0_25 = arith.constant 0 : index
    %25 = vector.load %arg2[%c3, %c0_24, %c0_25] : memref<9x4x128xbf16, #tpu.memory_space<vmem>>, vector<1x4x128xbf16>
    %26 = vector.shape_cast %25 : vector<1x4x128xbf16> to vector<4x128xbf16>
    %cst_26 = arith.constant dense<0.000000e+00> : vector<64x128xf32>
    %27 = tpu.matmul %24, %26, %cst_26 {dimension_numbers = #tpu.dot_dimension_numbers<[1], [0], [0], [1], [0, 0, 1, 1], [], []>} : vector<64x4xbf16>, vector<4x128xbf16>, vector<64x128xf32> -> vector<64x128xf32>
    %28 = arith.addf %21, %27 : vector<64x128xf32>
    %c0_27 = arith.constant 0 : index
    %c1_28 = arith.constant 1 : index
    %c0_29 = arith.constant 0 : index
    %c4_30 = arith.constant 4 : index
    %29 = vector.load %arg1[%c0_27, %c1_28, %c0_29, %c4_30] : memref<9x2x9x8xbf16, #tpu.memory_space<vmem>>, vector<8x1x8x4xbf16>
    %30 = vector.shape_cast %29 : vector<8x1x8x4xbf16> to vector<8x8x4xbf16>
    %31 = vector.shape_cast %30 : vector<8x8x4xbf16> to vector<64x4xbf16>
    %c4_31 = arith.constant 4 : index
    %c0_32 = arith.constant 0 : index
    %c0_33 = arith.constant 0 : index
    %32 = vector.load %arg2[%c4_31, %c0_32, %c0_33] : memref<9x4x128xbf16, #tpu.memory_space<vmem>>, vector<1x4x128xbf16>
    %33 = vector.shape_cast %32 : vector<1x4x128xbf16> to vector<4x128xbf16>
    %cst_34 = arith.constant dense<0.000000e+00> : vector<64x128xf32>
    %34 = tpu.matmul %31, %33, %cst_34 {dimension_numbers = #tpu.dot_dimension_numbers<[1], [0], [0], [1], [0, 0, 1, 1], [], []>} : vector<64x4xbf16>, vector<4x128xbf16>, vector<64x128xf32> -> vector<64x128xf32>
    %35 = arith.addf %28, %34 : vector<64x128xf32>
    %c0_35 = arith.constant 0 : index
    %c1_36 = arith.constant 1 : index
    %c1_37 = arith.constant 1 : index
    %c0_38 = arith.constant 0 : index
    %36 = vector.load %arg1[%c0_35, %c1_36, %c1_37, %c0_38] : memref<9x2x9x8xbf16, #tpu.memory_space<vmem>>, vector<8x1x8x4xbf16>
    %37 = vector.shape_cast %36 : vector<8x1x8x4xbf16> to vector<8x8x4xbf16>
    %38 = vector.shape_cast %37 : vector<8x8x4xbf16> to vector<64x4xbf16>
    %c5 = arith.constant 5 : index
    %c0_39 = arith.constant 0 : index
    %c0_40 = arith.constant 0 : index
    %39 = vector.load %arg2[%c5, %c0_39, %c0_40] : memref<9x4x128xbf16, #tpu.memory_space<vmem>>, vector<1x4x128xbf16>
    %40 = vector.shape_cast %39 : vector<1x4x128xbf16> to vector<4x128xbf16>
    %cst_41 = arith.constant dense<0.000000e+00> : vector<64x128xf32>
    %41 = tpu.matmul %38, %40, %cst_41 {dimension_numbers = #tpu.dot_dimension_numbers<[1], [0], [0], [1], [0, 0, 1, 1], [], []>} : vector<64x4xbf16>, vector<4x128xbf16>, vector<64x128xf32> -> vector<64x128xf32>
    %42 = arith.addf %35, %41 : vector<64x128xf32>
    %c1_42 = arith.constant 1 : index
    %c0_43 = arith.constant 0 : index
    %c0_44 = arith.constant 0 : index
    %c0_45 = arith.constant 0 : index
    %43 = vector.load %arg1[%c1_42, %c0_43, %c0_44, %c0_45] : memref<9x2x9x8xbf16, #tpu.memory_space<vmem>>, vector<8x1x8x4xbf16>
    %44 = vector.shape_cast %43 : vector<8x1x8x4xbf16> to vector<8x8x4xbf16>
    %45 = vector.shape_cast %44 : vector<8x8x4xbf16> to vector<64x4xbf16>
    %c6 = arith.constant 6 : index
    %c0_46 = arith.constant 0 : index
    %c0_47 = arith.constant 0 : index
    %46 = vector.load %arg2[%c6, %c0_46, %c0_47] : memref<9x4x128xbf16, #tpu.memory_space<vmem>>, vector<1x4x128xbf16>
    %47 = vector.shape_cast %46 : vector<1x4x128xbf16> to vector<4x128xbf16>
    %cst_48 = arith.constant dense<0.000000e+00> : vector<64x128xf32>
    %48 = tpu.matmul %45, %47, %cst_48 {dimension_numbers = #tpu.dot_dimension_numbers<[1], [0], [0], [1], [0, 0, 1, 1], [], []>} : vector<64x4xbf16>, vector<4x128xbf16>, vector<64x128xf32> -> vector<64x128xf32>
    %49 = arith.addf %42, %48 : vector<64x128xf32>
    %c1_49 = arith.constant 1 : index
    %c0_50 = arith.constant 0 : index
    %c0_51 = arith.constant 0 : index
    %c4_52 = arith.constant 4 : index
    %50 = vector.load %arg1[%c1_49, %c0_50, %c0_51, %c4_52] : memref<9x2x9x8xbf16, #tpu.memory_space<vmem>>, vector<8x1x8x4xbf16>
    %51 = vector.shape_cast %50 : vector<8x1x8x4xbf16> to vector<8x8x4xbf16>
    %52 = vector.shape_cast %51 : vector<8x8x4xbf16> to vector<64x4xbf16>
    %c7 = arith.constant 7 : index
    %c0_53 = arith.constant 0 : index
    %c0_54 = arith.constant 0 : index
    %53 = vector.load %arg2[%c7, %c0_53, %c0_54] : memref<9x4x128xbf16, #tpu.memory_space<vmem>>, vector<1x4x128xbf16>
    %54 = vector.shape_cast %53 : vector<1x4x128xbf16> to vector<4x128xbf16>
    %cst_55 = arith.constant dense<0.000000e+00> : vector<64x128xf32>
    %55 = tpu.matmul %52, %54, %cst_55 {dimension_numbers = #tpu.dot_dimension_numbers<[1], [0], [0], [1], [0, 0, 1, 1], [], []>} : vector<64x4xbf16>, vector<4x128xbf16>, vector<64x128xf32> -> vector<64x128xf32>
    %56 = arith.addf %49, %55 : vector<64x128xf32>
    %c1_56 = arith.constant 1 : index
    %c0_57 = arith.constant 0 : index
    %c1_58 = arith.constant 1 : index
    %c0_59 = arith.constant 0 : index
    %57 = vector.load %arg1[%c1_56, %c0_57, %c1_58, %c0_59] : memref<9x2x9x8xbf16, #tpu.memory_space<vmem>>, vector<8x1x8x4xbf16>
    %58 = vector.shape_cast %57 : vector<8x1x8x4xbf16> to vector<8x8x4xbf16>
    %59 = vector.shape_cast %58 : vector<8x8x4xbf16> to vector<64x4xbf16>
    %c8 = arith.constant 8 : index
    %c0_60 = arith.constant 0 : index
    %c0_61 = arith.constant 0 : index
    %60 = vector.load %arg2[%c8, %c0_60, %c0_61] : memref<9x4x128xbf16, #tpu.memory_space<vmem>>, vector<1x4x128xbf16>
    %61 = vector.shape_cast %60 : vector<1x4x128xbf16> to vector<4x128xbf16>
    %cst_62 = arith.constant dense<0.000000e+00> : vector<64x128xf32>
    %62 = tpu.matmul %59, %61, %cst_62 {dimension_numbers = #tpu.dot_dimension_numbers<[1], [0], [0], [1], [0, 0, 1, 1], [], []>} : vector<64x4xbf16>, vector<4x128xbf16>, vector<64x128xf32> -> vector<64x128xf32>
    %63 = arith.addf %56, %62 : vector<64x128xf32>
    %c0_63 = arith.constant 0 : index
    %c0_64 = arith.constant 0 : index
    %64 = vector.load %arg3[%c0_63, %c0_64] : memref<1x128xf32, #tpu.memory_space<vmem>>, vector<1x128xf32>
    %65 = vector.broadcast %64 : vector<1x128xf32> to vector<64x128xf32>
    %66 = arith.addf %63, %65 : vector<64x128xf32>
    %c0_65 = arith.constant 0 : index
    %c0_66 = arith.constant 0 : index
    %c0_67 = arith.constant 0 : index
    %67 = vector.load %arg4[%c0_65, %c0_66, %c0_67] : memref<1x64x128xf32, #tpu.memory_space<vmem>>, vector<1x64x128xf32>
    %68 = vector.shape_cast %67 : vector<1x64x128xf32> to vector<64x128xf32>
    %69 = vector.shape_cast %66 : vector<64x128xf32> to vector<1x64x128xf32>
    tpu.vector_store %arg4[%c0_65, %c0_66, %c0_67], %69 {strides = array<i32>} : memref<1x64x128xf32, #tpu.memory_space<vmem>>, vector<1x64x128xf32>,
    return
  }
  func.func @transform_0(%arg0: i32) -> (i32, i32, i32, i32) {
    %c0_i32 = arith.constant 0 : i32
    %c0_i32_0 = arith.constant 0 : i32
    %c0_i32_1 = arith.constant 0 : i32
    %c0_i32_2 = arith.constant 0 : i32
    return %arg0, %c0_i32, %c0_i32_0, %c0_i32_1 : i32, i32, i32, i32
  }
  func.func @transform_1(%arg0: i32) -> (i32, i32, i32) {
    %c0_i32 = arith.constant 0 : i32
    %c0_i32_0 = arith.constant 0 : i32
    %c0_i32_1 = arith.constant 0 : i32
    %c0_i32_2 = arith.constant 0 : i32
    return %c0_i32, %c0_i32_0, %c0_i32_1 : i32, i32, i32
  }
  func.func @transform_2(%arg0: i32) -> (i32, i32) {
    %c0_i32 = arith.constant 0 : i32
    %c0_i32_0 = arith.constant 0 : i32
    %c0_i32_1 = arith.constant 0 : i32
    return %c0_i32, %c0_i32_0 : i32, i32
  }
  func.func @transform_3(%arg0: i32) -> (i32, i32, i32) {
    %c0_i32 = arith.constant 0 : i32
    %c0_i32_0 = arith.constant 0 : i32
    %c0_i32_1 = arith.constant 0 : i32
    return %arg0, %c0_i32, %c0_i32_0 : i32, i32, i32
  }
}

</mosaic_0001>

<llo_original>
// kernel: tpu_custom_call.1
$region0: #{tpu_custom_call.1}
  #allocation0 [shape = 'u32[]', space=smem, size = 0x4, offset = 0x4, fixed_abs, tag = 'smem constant byte address 0x4 - core index']
  #allocation1 [shape = 'u32[144,128]{1,0:T(1,128)}', space=vmem, size = 0x12000, scoped, tag = 'internal scratch']
  %s0 = inlined_call_operand.vmem [shape: bf16[18,2,9,8], index: 0, kind: input, shape index: {}]
  %s1 = inlined_call_operand.vmem [shape: bf16[9,4,128], index: 1, kind: input, shape index: {}]
  %s2 = inlined_call_operand.vmem [shape: f32[1,128], index: 2, kind: input, shape index: {}]
  %s3 = inlined_call_operand.hbm [shape: f32[2,64,128], index: 3, kind: output, shape index: {}]
  %s4 = sld [smem:[#allocation0]]
  $region45: #{tpu_custom_call.1} parent=0
    _
  %s6 = ssub.s32 1, %s4
  %s7 = scalar_select 0, %s6, %s4
  $region1: #{tpu_custom_call.1} parent=0
    #allocation2 [shape = 'u8[65536]{0}', space=vmem, size = 0x10000, scoped, tag = 'output window, operand 0']
    #allocation3 [shape = 's32[2]{0}', space=sflag, size = 0x8, scoped, tag = 'scoped memory for tpu_custom_call.1']
    %8 = vsyncpa [#allocation3], 0
    %s9 = scalar_lea.sflag [#allocation3], 1
    %10 = vsyncpa %s9, 0
    loop: start=0, step=1, limit=4
    $region2: #{tpu_custom_call.1} parent=1 // loop_pre_header
      _
    $region3: #{tpu_custom_call.1} parent=1 // loop_header
      %s12 = sphi 0, %s16
      %p13 = scmp.ge.s32.totalorder %s12, 4
      %s22 = sphi 0, %s24
      %s25 = sphi 0, %s22
      %s26 = sphi 0, %s25
      %s42 = sphi 0, %s26
      %s46 = sphi 0, %s46
      %s48 = sphi 0, %s46
      %s49 = sphi 0, %s48
      %s63 = sphi 0, %s49
      %s67 = sphi 0, %s67
      %s69 = sphi 0, %s67
      %s70 = sphi 0, %s69
      %s84 = sphi 0, %s70
      %s90 = sphi 0, %s92
      %s93 = sphi 0, %s90
      %s94 = sphi 0, %s93
      %s110 = sphi 0, %s94
    $region4: #{tpu_custom_call.1} parent=1 // loop_header_branch
      %15 = sbr.rel (%p13) target = $region8
    $region5: #{tpu_custom_call.1} parent=1 // loop_body
      %s17 = ssub.s32 %s12, 1
      %s18 = ssub.s32 %s12, 2
      %s19 = sadd.s32 %s12, 1
      %s20 = ssub.s32 %s12, %s19
      %p21 = scmp.eq.s32.totalorder %s20, 0
      %s23 = sadd.s32 %s22, 1
      %s24 = scalar_select %p21, %s22, %s23
      %p27 = pneg %p21
      %p28 = scmp.eq.s32.totalorder %s12, 1
      %p29 = por %p27, %p28
      %p30 = scmp.ne.s32.totalorder %s22, %s25
      %p31 = scmp.eq.s32.totalorder %s12, 0
      %p32 = por %p30, %p31
      %p33 = scmp.ne.s32.totalorder %s22, %s25
      %p34 = scmp.eq.s32.totalorder %s17, 1
      %p35 = por %p33, %p34
      %p36 = scmp.ne.s32.totalorder %s25, %s26
      %p37 = scmp.eq.s32.totalorder %s17, 0
      %p38 = por %p36, %p37
      %p39 = scmp.ne.s32.totalorder %s25, %s26
      %p40 = scmp.eq.s32.totalorder %s18, 1
      %p41 = por %p39, %p40
      %p43 = scmp.ne.s32.totalorder %s26, %s42
      %p44 = scmp.eq.s32.totalorder %s18, 0
      %p45 = por %p43, %p44
      %s47 = sadd.s32 %s46, 1
      %p50 = scmp.eq.s32.totalorder %s12, 1
      %p51 = scmp.ne.s32.totalorder %s46, %s48
      %p52 = scmp.eq.s32.totalorder %s12, 0
      %p53 = por %p51, %p52
      %p54 = scmp.ne.s32.totalorder %s46, %s48
      %p55 = scmp.eq.s32.totalorder %s17, 1
      %p56 = por %p54, %p55
      %p57 = scmp.ne.s32.totalorder %s48, %s49
      %p58 = scmp.eq.s32.totalorder %s17, 0
      %p59 = por %p57, %p58
      %p60 = scmp.ne.s32.totalorder %s48, %s49
      %p61 = scmp.eq.s32.totalorder %s18, 1
      %p62 = por %p60, %p61
      %p64 = scmp.ne.s32.totalorder %s49, %s63
      %p65 = scmp.eq.s32.totalorder %s18, 0
      %p66 = por %p64, %p65
      %s68 = sadd.s32 %s67, 1
      %p71 = scmp.eq.s32.totalorder %s12, 1
      %p72 = scmp.ne.s32.totalorder %s67, %s69
      %p73 = scmp.eq.s32.totalorder %s12, 0
      %p74 = por %p72, %p73
      %p75 = scmp.ne.s32.totalorder %s67, %s69
      %p76 = scmp.eq.s32.totalorder %s17, 1
      %p77 = por %p75, %p76
      %p78 = scmp.ne.s32.totalorder %s69, %s70
      %p79 = scmp.eq.s32.totalorder %s17, 0
      %p80 = por %p78, %p79
      %p81 = scmp.ne.s32.totalorder %s69, %s70
      %p82 = scmp.eq.s32.totalorder %s18, 1
      %p83 = por %p81, %p82
      %p85 = scmp.ne.s32.totalorder %s70, %s84
      %p86 = scmp.eq.s32.totalorder %s18, 0
      %p87 = por %p85, %p86
      %s88 = ssub.s32 %s12, %s19
      %p89 = scmp.eq.s32.totalorder %s88, 0
      %s91 = sadd.s32 %s90, 1
      %s92 = scalar_select %p89, %s90, %s91
      %p95 = pneg %p89
      %p96 = scmp.eq.s32.totalorder %s12, 1
      %p97 = por %p95, %p96
      %p98 = scmp.ne.s32.totalorder %s90, %s93
      %p99 = scmp.eq.s32.totalorder %s12, 0
      %p100 = por %p98, %p99
      %p101 = scmp.ne.s32.totalorder %s90, %s93
      %p102 = scmp.eq.s32.totalorder %s17, 1
      %p103 = por %p101, %p102
      %p104 = scmp.ne.s32.totalorder %s93, %s94
      %p105 = scmp.eq.s32.totalorder %s17, 0
      %p106 = por %p104, %p105
      %p107 = scmp.ne.s32.totalorder %s93, %s94
      %p108 = scmp.eq.s32.totalorder %s18, 1
      %p109 = por %p107, %p108
      %p111 = scmp.ne.s32.totalorder %s94, %s110
      %p112 = scmp.eq.s32.totalorder %s18, 0
      %p113 = por %p111, %p112
      %p114 = scmp.le.s32.totalorder 1, %s12
      %p115 = scmp.lt.s32.totalorder %s12, 3
      %p116 = pnand %p114, %p115
      %p117 = pneg %p116
      // Predicated region
      $region9: #{tpu_custom_call.1} parent=5 // pred_check
        _
      $region10: #{tpu_custom_call.1} parent=5 // pred_check_branch
        %119 = sbr.rel (%p116) target = $region12
      $region11: #{tpu_custom_call.1} parent=5 // pred_region
        %s120 = ssub.s32 %s12, 1
        // Predicated region
        $region13: #{tpu_custom_call.1} parent=11 // pred_check
          %p121 = pneg %p59
        $region14: #{tpu_custom_call.1} parent=11 // pred_check_branch
          %123 = sbr.rel (%p121) target = $region16
        $region15: #{tpu_custom_call.1} parent=11 // pred_region
          _
        $region16: #{tpu_custom_call.1} parent=11 // pred_fallthru
          _
        // Predicated region
        $region17: #{tpu_custom_call.1} parent=11 // pred_check
          %p124 = pneg %p80
        $region18: #{tpu_custom_call.1} parent=11 // pred_check_branch
          %126 = sbr.rel (%p124) target = $region20
        $region19: #{tpu_custom_call.1} parent=11 // pred_region
          _
        $region20: #{tpu_custom_call.1} parent=11 // pred_fallthru
          _
      $region12: #{tpu_custom_call.1} parent=5 // pred_fallthru
        _
      %p127 = scmp.lt.s32.totalorder %s12, 2
      // Predicated region
      $region21: #{tpu_custom_call.1} parent=5 // pred_check
        %p128 = pneg %p127
      $region22: #{tpu_custom_call.1} parent=5 // pred_check_branch
        %130 = sbr.rel (%p128) target = $region24
      $region23: #{tpu_custom_call.1} parent=5 // pred_region
        // Predicated region
        $region25: #{tpu_custom_call.1} parent=23 // pred_check
          %p131 = pneg %p32
        $region26: #{tpu_custom_call.1} parent=23 // pred_check_branch
          %133 = sbr.rel (%p131) target = $region28
        $region27: #{tpu_custom_call.1} parent=23 // pred_region
          %s134 = smul.u32 9, %s12
          %p135 = scmp.lt.s32.totalorder %s134, 17
          %s136 = scalar_select %p135, %s134, 17
          %s137 = smul.addr %s136, 4
          %s138 = smul.addr %s137, 4
          %s139 = scalar_lea.vmem %s0, %s138
          %s140 = smul.u32 9, %s12
        $region28: #{tpu_custom_call.1} parent=23 // pred_fallthru
          _
      $region24: #{tpu_custom_call.1} parent=5 // pred_fallthru
        _
      %p141 = scmp.le.s32.totalorder 1, %s12
      %p142 = scmp.lt.s32.totalorder %s12, 3
      %p143 = pnand %p141, %p142
      %p144 = pneg %p143
      // Predicated region
      $region29: #{tpu_custom_call.1} parent=5 // pred_check
        _
      $region30: #{tpu_custom_call.1} parent=5 // pred_check_branch
        %146 = sbr.rel (%p143) target = $region32
      $region31: #{tpu_custom_call.1} parent=5 // pred_region
        %s147 = ssub.s32 %s12, 1
        %s148 = smul.u32 9, %s17
        %p149 = scmp.lt.s32.totalorder %s148, 17
        %s150 = scalar_select %p149, %s148, 17
        %s151 = smul.addr %s150, 4
        %s152 = smul.addr %s151, 4
        %s153 = scalar_lea.vmem %s0, %s152
        %p154 = pneg %p38
        %p155 = pneg %p35
        %p156 = pneg %p59
        %p157 = pneg %p56
        %p158 = pneg %p80
        %p159 = pneg %p77
        %p160 = pneg %p106
        %p161 = pneg %p103
        %s162 = sand.u32 %s93, 1
        %s163 = scalar_lea.sflag [#allocation3], %s162
        %s164 = sand.u32 %s93, 1
        %s165 = smul.addr %s164, 64
        %s166 = scalar_lea.vmem [#allocation2], %s165
        %s167 = smul.u32 9, %s17
        %p168 = scmp.lt.s32.totalorder %s167, 17
        %s169 = scalar_select %p168, %s167, 17
        %s170 = smul.addr %s169, 4
        %s171 = smul.addr %s170, 4
        %s172 = scalar_lea.vmem %s0, %s171
        %s173 = smul.u32 9, %s17
        %v175 = vld [vmem:[%s172] sm:$0xf]
        %v176 = vld [vmem:[%s172 + $0x10] sm:$0xf]
        %v177 = vld [vmem:[%s172 + $0x20] sm:$0xf]
        %v178 = vld [vmem:[%s172 + $0x30] sm:$0xf]
        %v179 = vld [vmem:[%s172 + $0x40] sm:$0xf]
        %v180 = vld [vmem:[%s172 + $0x50] sm:$0xf]
        %v181 = vld [vmem:[%s172 + $0x60] sm:$0xf]
        %v182 = vld [vmem:[%s172 + $0x70] sm:$0xf]
        %v183 = vld [vmem:[%s1] sm:$0x3]
        %s184 = scalar_lea.vmem %s1, 2
        %v185 = vld [vmem:[%s184] sm:$0x3]
        %v194 = vunpack.c.l.b16 %v175
        %v195 = vunpack.c.l.b16 %v176
        %v196 = vunpack.c.l.b16 %v177
        %v197 = vunpack.c.l.b16 %v178
        %v198 = vunpack.c.l.b16 %v179
        %v199 = vunpack.c.l.b16 %v180
        %v200 = vunpack.c.l.b16 %v181
        %v201 = vunpack.c.l.b16 %v182
        %v202 = vpack.c.b16 %v195, %v194
        %v203 = vpack.c.b16 %v197, %v196
        %v204 = vpack.c.b16 %v199, %v198
        %v205 = vpack.c.b16 %v201, %v200
        %206 = vrot.lane.b32.xlu0 %v202, 124
        %v207 = vpop.permute.xlu0 %206
        %208 = vrot.lane.b32.xlu0 %v203, 124
        %v209 = vpop.permute.xlu0 %208
        %210 = vrot.lane.b32.xlu0 %v204, 124
        %v211 = vpop.permute.xlu0 %210
        %212 = vrot.lane.b32.xlu0 %v205, 124
        %v213 = vpop.permute.xlu0 %212
        %vm214 = vcmask 31744
        %v216 = vsel %vm214, %v207, 0
        %v219 = vsel %vm214, %v209, 0
        %v222 = vsel %vm214, %v211, 0
        %v225 = vsel %vm214, %v213, 0
        %vm227 = vcmask 1041408
        %v229 = vsel %vm227, %v185, 0
        %231 = vmatprep.subr.bf16.mxu0 0
        %232 = vmatpush1.bf16.msra.mxu0 %v229
        %233 = vmatprep.subr.bf16.mxu0 0
        %234 = vmatpush1.bf16.msra.mxu0 0
        %235 = vmatprep.subr.bf16.mxu0 0
        %236 = vmatpush1.bf16.msra.mxu0 0
        %237 = vmatprep.subr.bf16.mxu0 0
        %238 = vmatpush1.bf16.msra.mxu0 0
        %239 = vmatprep.subr.bf16.mxu0 0
        %240 = vmatpush1.bf16.msra.mxu0 0
        %241 = vmatprep.subr.bf16.mxu0 0
        %242 = vmatpush1.bf16.msra.mxu0 0
        %243 = vmatprep.subr.bf16.mxu0 0
        %244 = vmatpush1.bf16.msra.mxu0 0
        %245 = vmatprep.subr.bf16.mxu0 0
        %246 = vmatpush1.bf16.msra.mxu0 0
        %247 = vmatprep.subr.bf16.mxu0 0
        %248 = vmatpush1.bf16.msra.mxu0 0
        %249 = vmatprep.subr.bf16.mxu0 0
        %250 = vmatpush1.bf16.msra.mxu0 0
        %251 = vmatprep.subr.bf16.mxu0 0
        %252 = vmatpush1.bf16.msra.mxu0 0
        %253 = vmatprep.subr.bf16.mxu0 0
        %254 = vmatpush1.bf16.msra.mxu0 0
        %255 = vmatprep.subr.bf16.mxu0 0
        %256 = vmatpush1.bf16.msra.mxu0 0
        %257 = vmatprep.subr.bf16.mxu0 0
        %258 = vmatpush1.bf16.msra.mxu0 0
        %259 = vmatprep.subr.bf16.mxu0 0
        %260 = vmatpush1.bf16.msra.mxu0 0
        %261 = vmatprep.subr.bf16.mxu0 0
        %262 = vmatpush1.bf16.msra.mxu0 0
        %263 = vmatprep.mubr.bf16.mxu0 0
        %264 = vmatmul.mubr.bf16.gmra.mrb[0].mxu0 %v216
        %v265 = vpop.f32.mrb[0].mxu0
        %v266 = vadd.f32 0.0, %v265
        %v267 = vpop.f32.mrb[0].mxu0
        %v268 = vpop.f32.mrb[0].mxu0
        %v269 = vadd.f32 0.0, %v268
        %v270 = vpop.f32.mrb[0].mxu0
        %271 = vmatprep.mubr.bf16.mxu0 0
        %272 = vmatmul.mubr.bf16.gmra.mrb[0].mxu0 %v219
        %v273 = vpop.f32.mrb[0].mxu0
        %v274 = vadd.f32 0.0, %v273
        %v275 = vpop.f32.mrb[0].mxu0
        %v276 = vpop.f32.mrb[0].mxu0
        %v277 = vadd.f32 0.0, %v276
        %v278 = vpop.f32.mrb[0].mxu0
        %279 = vmatprep.mubr.bf16.mxu0 0
        %280 = vmatmul.mubr.bf16.gmra.mrb[0].mxu0 %v222
        %v281 = vpop.f32.mrb[0].mxu0
        %v282 = vadd.f32 0.0, %v281
        %v283 = vpop.f32.mrb[0].mxu0
        %v284 = vpop.f32.mrb[0].mxu0
        %v285 = vadd.f32 0.0, %v284
        %v286 = vpop.f32.mrb[0].mxu0
        %287 = vmatprep.mubr.bf16.mxu0 0
        %288 = vmatmul.mubr.bf16.gmra.mrb[0].mxu0 %v225
        %v289 = vpop.f32.mrb[0].mxu0
        %v290 = vadd.f32 0.0, %v289
        %v291 = vpop.f32.mrb[0].mxu0
        %v292 = vpop.f32.mrb[0].mxu0
        %v293 = vadd.f32 0.0, %v292
        %v294 = vpop.f32.mrb[0].mxu0
        %295 = vdwg.mxu0
        %v297 = vsel %vm214, %v202, 0
        %v300 = vsel %vm214, %v203, 0
        %v303 = vsel %vm214, %v204, 0
        %v306 = vsel %vm214, %v205, 0
        %v309 = vsel %vm227, %v183, 0
        %311 = vmatprep.subr.bf16.mxu0 0
        %312 = vmatpush1.bf16.msra.mxu0 %v309
        %313 = vmatprep.subr.bf16.mxu0 0
        %314 = vmatpush1.bf16.msra.mxu0 0
        %315 = vmatprep.subr.bf16.mxu0 0
        %316 = vmatpush1.bf16.msra.mxu0 0
        %317 = vmatprep.subr.bf16.mxu0 0
        %318 = vmatpush1.bf16.msra.mxu0 0
        %319 = vmatprep.subr.bf16.mxu0 0
        %320 = vmatpush1.bf16.msra.mxu0 0
        %321 = vmatprep.subr.bf16.mxu0 0
        %322 = vmatpush1.bf16.msra.mxu0 0
        %323 = vmatprep.subr.bf16.mxu0 0
        %324 = vmatpush1.bf16.msra.mxu0 0
        %325 = vmatprep.subr.bf16.mxu0 0
        %326 = vmatpush1.bf16.msra.mxu0 0
        %327 = vmatprep.subr.bf16.mxu0 0
        %328 = vmatpush1.bf16.msra.mxu0 0
        %329 = vmatprep.subr.bf16.mxu0 0
        %330 = vmatpush1.bf16.msra.mxu0 0
        %331 = vmatprep.subr.bf16.mxu0 0
        %332 = vmatpush1.bf16.msra.mxu0 0
        %333 = vmatprep.subr.bf16.mxu0 0
        %334 = vmatpush1.bf16.msra.mxu0 0
        %335 = vmatprep.subr.bf16.mxu0 0
        %336 = vmatpush1.bf16.msra.mxu0 0
        %337 = vmatprep.subr.bf16.mxu0 0
        %338 = vmatpush1.bf16.msra.mxu0 0
        %339 = vmatprep.subr.bf16.mxu0 0
        %340 = vmatpush1.bf16.msra.mxu0 0
        %341 = vmatprep.subr.bf16.mxu0 0
        %342 = vmatpush1.bf16.msra.mxu0 0
        %343 = vmatprep.mubr.bf16.mxu0 0
        %344 = vmatmul.mubr.bf16.gmra.mrb[0].mxu0 %v297
        %v345 = vpop.f32.mrb[0].mxu0
        %v346 = vadd.f32 %v266, %v345
        %v347 = vpop.f32.mrb[0].mxu0
        %v348 = vpop.f32.mrb[0].mxu0
        %v349 = vadd.f32 %v269, %v348
        %v350 = vpop.f32.mrb[0].mxu0
        %351 = vmatprep.mubr.bf16.mxu0 0
        %352 = vmatmul.mubr.bf16.gmra.mrb[0].mxu0 %v300
        %v353 = vpop.f32.mrb[0].mxu0
        %v354 = vadd.f32 %v274, %v353
        %v355 = vpop.f32.mrb[0].mxu0
        %v356 = vpop.f32.mrb[0].mxu0
        %v357 = vadd.f32 %v277, %v356
        %v358 = vpop.f32.mrb[0].mxu0
        %359 = vmatprep.mubr.bf16.mxu0 0
        %360 = vmatmul.mubr.bf16.gmra.mrb[0].mxu0 %v303
        %v361 = vpop.f32.mrb[0].mxu0
        %v362 = vadd.f32 %v282, %v361
        %v363 = vpop.f32.mrb[0].mxu0
        %v364 = vpop.f32.mrb[0].mxu0
        %v365 = vadd.f32 %v285, %v364
        %v366 = vpop.f32.mrb[0].mxu0
        %367 = vmatprep.mubr.bf16.mxu0 0
        %368 = vmatmul.mubr.bf16.gmra.mrb[0].mxu0 %v306
        %v369 = vpop.f32.mrb[0].mxu0
        %v370 = vadd.f32 %v290, %v369
        %v371 = vpop.f32.mrb[0].mxu0
        %v372 = vpop.f32.mrb[0].mxu0
        %v373 = vadd.f32 %v293, %v372
        %v374 = vpop.f32.mrb[0].mxu0
        %375 = vdwg.mxu0
        %v376 = vld [vmem:[%s172] sm:$0xf]
        %v377 = vld [vmem:[%s172 + $0x4] sm:$0x1]
        %v378 = vld [vmem:[%s172 + $0x10] sm:$0xf]
        %v379 = vld [vmem:[%s172 + $0x14] sm:$0x1]
        %v380 = vld [vmem:[%s172 + $0x20] sm:$0xf]
        %v381 = vld [vmem:[%s172 + $0x24] sm:$0x1]
        %v382 = vld [vmem:[%s172 + $0x30] sm:$0xf]
        %v383 = vld [vmem:[%s172 + $0x34] sm:$0x1]
        %v384 = vld [vmem:[%s172 + $0x40] sm:$0xf]
        %v385 = vld [vmem:[%s172 + $0x44] sm:$0x1]
        %v386 = vld [vmem:[%s172 + $0x50] sm:$0xf]
        %v387 = vld [vmem:[%s172 + $0x54] sm:$0x1]
        %v388 = vld [vmem:[%s172 + $0x60] sm:$0xf]
        %v389 = vld [vmem:[%s172 + $0x64] sm:$0x1]
        %v390 = vld [vmem:[%s172 + $0x70] sm:$0xf]
        %v391 = vld [vmem:[%s172 + $0x74] sm:$0x1]
        %vm392 = vsmask.f32 3328
        %vm393 = vsmask.f32 7440
        %vm394 = vmor %vm392, %vm393
        %v396 = vshrl.u32 %v376, 16
        %v398 = vrot.slane %v396, 4
        %v399 = vshll.u32 %v376, 16
        %v401 = vrot.slane %v399, 5
        %v402 = vor.u32 %v398, %v401
        %v403 = vrot.slane %v402, 4
        %v405 = vshll.u32 %v377, 16
        %v407 = vrot.slane %v405, 5
        %v408 = vsel %vm394, %v403, %v407
        %v410 = vshrl.u32 %v378, 16
        %v412 = vrot.slane %v410, 4
        %v413 = vshll.u32 %v378, 16
        %v415 = vrot.slane %v413, 5
        %v416 = vor.u32 %v412, %v415
        %v417 = vrot.slane %v416, 4
        %v419 = vshll.u32 %v379, 16
        %v421 = vrot.slane %v419, 5
        %v422 = vsel %vm394, %v417, %v421
        %v424 = vshrl.u32 %v380, 16
        %v426 = vrot.slane %v424, 4
        %v427 = vshll.u32 %v380, 16
        %v429 = vrot.slane %v427, 5
        %v430 = vor.u32 %v426, %v429
        %v431 = vrot.slane %v430, 4
        %v433 = vshll.u32 %v381, 16
        %v435 = vrot.slane %v433, 5
        %v436 = vsel %vm394, %v431, %v435
        %v438 = vshrl.u32 %v382, 16
        %v440 = vrot.slane %v438, 4
        %v441 = vshll.u32 %v382, 16
        %v443 = vrot.slane %v441, 5
        %v444 = vor.u32 %v440, %v443
        %v445 = vrot.slane %v444, 4
        %v447 = vshll.u32 %v383, 16
        %v449 = vrot.slane %v447, 5
        %v450 = vsel %vm394, %v445, %v449
        %v452 = vshrl.u32 %v384, 16
        %v454 = vrot.slane %v452, 4
        %v455 = vshll.u32 %v384, 16
        %v457 = vrot.slane %v455, 5
        %v458 = vor.u32 %v454, %v457
        %v459 = vrot.slane %v458, 4
        %v461 = vshll.u32 %v385, 16
        %v463 = vrot.slane %v461, 5
        %v464 = vsel %vm394, %v459, %v463
        %v466 = vshrl.u32 %v386, 16
        %v468 = vrot.slane %v466, 4
        %v469 = vshll.u32 %v386, 16
        %v471 = vrot.slane %v469, 5
        %v472 = vor.u32 %v468, %v471
        %v473 = vrot.slane %v472, 4
        %v475 = vshll.u32 %v387, 16
        %v477 = vrot.slane %v475, 5
        %v478 = vsel %vm394, %v473, %v477
        %v480 = vshrl.u32 %v388, 16
        %v482 = vrot.slane %v480, 4
        %v483 = vshll.u32 %v388, 16
        %v485 = vrot.slane %v483, 5
        %v486 = vor.u32 %v482, %v485
        %v487 = vrot.slane %v486, 4
        %v489 = vshll.u32 %v389, 16
        %v491 = vrot.slane %v489, 5
        %v492 = vsel %vm394, %v487, %v491
        %v494 = vshrl.u32 %v390, 16
        %v496 = vrot.slane %v494, 4
        %v497 = vshll.u32 %v390, 16
        %v499 = vrot.slane %v497, 5
        %v500 = vor.u32 %v496, %v499
        %v501 = vrot.slane %v500, 4
        %v503 = vshll.u32 %v391, 16
        %v505 = vrot.slane %v503, 5
        %v506 = vsel %vm394, %v501, %v505
        %s507 = scalar_lea.vmem %s1, 4
        %v508 = vld [vmem:[%s507] sm:$0x3]
        %v509 = vunpack.c.l.b16 %v408
        %v510 = vunpack.c.l.b16 %v422
        %v511 = vunpack.c.l.b16 %v436
        %v512 = vunpack.c.l.b16 %v450
        %v513 = vunpack.c.l.b16 %v464
        %v514 = vunpack.c.l.b16 %v478
        %v515 = vunpack.c.l.b16 %v492
        %v516 = vunpack.c.l.b16 %v506
        %v517 = vpack.c.b16 %v510, %v509
        %v518 = vpack.c.b16 %v512, %v511
        %v519 = vpack.c.b16 %v514, %v513
        %v520 = vpack.c.b16 %v516, %v515
        %v522 = vsel %vm214, %v517, 0
        %v525 = vsel %vm214, %v518, 0
        %v528 = vsel %vm214, %v519, 0
        %v531 = vsel %vm214, %v520, 0
        %v534 = vsel %vm227, %v508, 0
        %536 = vmatprep.subr.bf16.mxu0 0
        %537 = vmatpush1.bf16.msra.mxu0 %v534
        %538 = vmatprep.subr.bf16.mxu0 0
        %539 = vmatpush1.bf16.msra.mxu0 0
        %540 = vmatprep.subr.bf16.mxu0 0
        %541 = vmatpush1.bf16.msra.mxu0 0
        %542 = vmatprep.subr.bf16.mxu0 0
        %543 = vmatpush1.bf16.msra.mxu0 0
        %544 = vmatprep.subr.bf16.mxu0 0
        %545 = vmatpush1.bf16.msra.mxu0 0
        %546 = vmatprep.subr.bf16.mxu0 0
        %547 = vmatpush1.bf16.msra.mxu0 0
        %548 = vmatprep.subr.bf16.mxu0 0
        %549 = vmatpush1.bf16.msra.mxu0 0
        %550 = vmatprep.subr.bf16.mxu0 0
        %551 = vmatpush1.bf16.msra.mxu0 0
        %552 = vmatprep.subr.bf16.mxu0 0
        %553 = vmatpush1.bf16.msra.mxu0 0
        %554 = vmatprep.subr.bf16.mxu0 0
        %555 = vmatpush1.bf16.msra.mxu0 0
        %556 = vmatprep.subr.bf16.mxu0 0
        %557 = vmatpush1.bf16.msra.mxu0 0
        %558 = vmatprep.subr.bf16.mxu0 0
        %559 = vmatpush1.bf16.msra.mxu0 0
        %560 = vmatprep.subr.bf16.mxu0 0
        %561 = vmatpush1.bf16.msra.mxu0 0
        %562 = vmatprep.subr.bf16.mxu0 0
        %563 = vmatpush1.bf16.msra.mxu0 0
        %564 = vmatprep.subr.bf16.mxu0 0
        %565 = vmatpush1.bf16.msra.mxu0 0
        %566 = vmatprep.subr.bf16.mxu0 0
        %567 = vmatpush1.bf16.msra.mxu0 0
        %568 = vmatprep.mubr.bf16.mxu0 0
        %569 = vmatmul.mubr.bf16.gmra.mrb[0].mxu0 %v522
        %v570 = vpop.f32.mrb[0].mxu0
        %v571 = vadd.f32 0.0, %v570
        %v572 = vpop.f32.mrb[0].mxu0
        %v573 = vpop.f32.mrb[0].mxu0
        %v574 = vadd.f32 0.0, %v573
        %v575 = vpop.f32.mrb[0].mxu0
        %576 = vmatprep.mubr.bf16.mxu0 0
        %577 = vmatmul.mubr.bf16.gmra.mrb[0].mxu0 %v525
        %v578 = vpop.f32.mrb[0].mxu0
        %v579 = vadd.f32 0.0, %v578
        %v580 = vpop.f32.mrb[0].mxu0
        %v581 = vpop.f32.mrb[0].mxu0
        %v582 = vadd.f32 0.0, %v581
        %v583 = vpop.f32.mrb[0].mxu0
        %584 = vmatprep.mubr.bf16.mxu0 0
        %585 = vmatmul.mubr.bf16.gmra.mrb[0].mxu0 %v528
        %v586 = vpop.f32.mrb[0].mxu0
        %v587 = vadd.f32 0.0, %v586
        %v588 = vpop.f32.mrb[0].mxu0
        %v589 = vpop.f32.mrb[0].mxu0
        %v590 = vadd.f32 0.0, %v589
        %v591 = vpop.f32.mrb[0].mxu0
        %592 = vmatprep.mubr.bf16.mxu0 0
        %593 = vmatmul.mubr.bf16.gmra.mrb[0].mxu0 %v531
        %v594 = vpop.f32.mrb[0].mxu0
        %v595 = vadd.f32 0.0, %v594
        %v596 = vpop.f32.mrb[0].mxu0
        %v597 = vpop.f32.mrb[0].mxu0
        %v598 = vadd.f32 0.0, %v597
        %v599 = vpop.f32.mrb[0].mxu0
        %600 = vdwg.mxu0
        %v601 = vadd.f32 %v346, %v571
        %v602 = vadd.f32 %v349, %v574
        %v603 = vadd.f32 %v354, %v579
        %v604 = vadd.f32 %v357, %v582
        %v605 = vadd.f32 %v362, %v587
        %v606 = vadd.f32 %v365, %v590
        %v607 = vadd.f32 %v370, %v595
        %v608 = vadd.f32 %v373, %v598
        %s609 = scalar_lea.vmem %s172, 8
        %v610 = vld [vmem:[%s609] sm:$0xf]
        %v611 = vld [vmem:[%s609 + $0x10] sm:$0xf]
        %v612 = vld [vmem:[%s609 + $0x20] sm:$0xf]
        %v613 = vld [vmem:[%s609 + $0x30] sm:$0xf]
        %v614 = vld [vmem:[%s609 + $0x40] sm:$0xf]
        %v615 = vld [vmem:[%s609 + $0x50] sm:$0xf]
        %v616 = vld [vmem:[%s609 + $0x60] sm:$0xf]
        %v617 = vld [vmem:[%s609 + $0x70] sm:$0xf]
        %s618 = scalar_lea.vmem %s1, 6
        %v619 = vld [vmem:[%s618] sm:$0x3]
        %v628 = vunpack.c.l.b16 %v610
        %v629 = vunpack.c.l.b16 %v611
        %v630 = vunpack.c.l.b16 %v612
        %v631 = vunpack.c.l.b16 %v613
        %v632 = vunpack.c.l.b16 %v614
        %v633 = vunpack.c.l.b16 %v615
        %v634 = vunpack.c.l.b16 %v616
        %v635 = vunpack.c.l.b16 %v617
        %v636 = vpack.c.b16 %v629, %v628
        %v637 = vpack.c.b16 %v631, %v630
        %v638 = vpack.c.b16 %v633, %v632
        %v639 = vpack.c.b16 %v635, %v634
        %v641 = vsel %vm214, %v636, 0
        %v644 = vsel %vm214, %v637, 0
        %v647 = vsel %vm214, %v638, 0
        %v650 = vsel %vm214, %v639, 0
        %v653 = vsel %vm227, %v619, 0
        %655 = vmatprep.subr.bf16.mxu0 0
        %656 = vmatpush1.bf16.msra.mxu0 %v653
        %657 = vmatprep.subr.bf16.mxu0 0
        %658 = vmatpush1.bf16.msra.mxu0 0
        %659 = vmatprep.subr.bf16.mxu0 0
        %660 = vmatpush1.bf16.msra.mxu0 0
        %661 = vmatprep.subr.bf16.mxu0 0
        %662 = vmatpush1.bf16.msra.mxu0 0
        %663 = vmatprep.subr.bf16.mxu0 0
        %664 = vmatpush1.bf16.msra.mxu0 0
        %665 = vmatprep.subr.bf16.mxu0 0
        %666 = vmatpush1.bf16.msra.mxu0 0
        %667 = vmatprep.subr.bf16.mxu0 0
        %668 = vmatpush1.bf16.msra.mxu0 0
        %669 = vmatprep.subr.bf16.mxu0 0
        %670 = vmatpush1.bf16.msra.mxu0 0
        %671 = vmatprep.subr.bf16.mxu0 0
        %672 = vmatpush1.bf16.msra.mxu0 0
        %673 = vmatprep.subr.bf16.mxu0 0
        %674 = vmatpush1.bf16.msra.mxu0 0
        %675 = vmatprep.subr.bf16.mxu0 0
        %676 = vmatpush1.bf16.msra.mxu0 0
        %677 = vmatprep.subr.bf16.mxu0 0
        %678 = vmatpush1.bf16.msra.mxu0 0
        %679 = vmatprep.subr.bf16.mxu0 0
        %680 = vmatpush1.bf16.msra.mxu0 0
        %681 = vmatprep.subr.bf16.mxu0 0
        %682 = vmatpush1.bf16.msra.mxu0 0
        %683 = vmatprep.subr.bf16.mxu0 0
        %684 = vmatpush1.bf16.msra.mxu0 0
        %685 = vmatprep.subr.bf16.mxu0 0
        %686 = vmatpush1.bf16.msra.mxu0 0
        %687 = vmatprep.mubr.bf16.mxu0 0
        %688 = vmatmul.mubr.bf16.gmra.mrb[0].mxu0 %v641
        %v689 = vpop.f32.mrb[0].mxu0
        %v690 = vadd.f32 0.0, %v689
        %v691 = vpop.f32.mrb[0].mxu0
        %v692 = vpop.f32.mrb[0].mxu0
        %v693 = vadd.f32 0.0, %v692
        %v694 = vpop.f32.mrb[0].mxu0
        %695 = vmatprep.mubr.bf16.mxu0 0
        %696 = vmatmul.mubr.bf16.gmra.mrb[0].mxu0 %v644
        %v697 = vpop.f32.mrb[0].mxu0
        %v698 = vadd.f32 0.0, %v697
        %v699 = vpop.f32.mrb[0].mxu0
        %v700 = vpop.f32.mrb[0].mxu0
        %v701 = vadd.f32 0.0, %v700
        %v702 = vpop.f32.mrb[0].mxu0
        %703 = vmatprep.mubr.bf16.mxu0 0
        %704 = vmatmul.mubr.bf16.gmra.mrb[0].mxu0 %v647
        %v705 = vpop.f32.mrb[0].mxu0
        %v706 = vadd.f32 0.0, %v705
        %v707 = vpop.f32.mrb[0].mxu0
        %v708 = vpop.f32.mrb[0].mxu0
        %v709 = vadd.f32 0.0, %v708
        %v710 = vpop.f32.mrb[0].mxu0
        %711 = vmatprep.mubr.bf16.mxu0 0
        %712 = vmatmul.mubr.bf16.gmra.mrb[0].mxu0 %v650
        %v713 = vpop.f32.mrb[0].mxu0
        %v714 = vadd.f32 0.0, %v713
        %v715 = vpop.f32.mrb[0].mxu0
        %v716 = vpop.f32.mrb[0].mxu0
        %v717 = vadd.f32 0.0, %v716
        %v718 = vpop.f32.mrb[0].mxu0
        %719 = vdwg.mxu0
        %v720 = vadd.f32 %v601, %v690
        %v721 = vadd.f32 %v602, %v693
        %v722 = vadd.f32 %v603, %v698
        %v723 = vadd.f32 %v604, %v701
        %v724 = vadd.f32 %v605, %v706
        %v725 = vadd.f32 %v606, %v709
        %v726 = vadd.f32 %v607, %v714
        %v727 = vadd.f32 %v608, %v717
        %s728 = scalar_lea.vmem %s1, 8
        %v729 = vld [vmem:[%s728] sm:$0x3]
        %730 = vrot.lane.b32.xlu0 %v636, 124
        %v731 = vpop.permute.xlu0 %730
        %732 = vrot.lane.b32.xlu0 %v637, 124
        %v733 = vpop.permute.xlu0 %732
        %734 = vrot.lane.b32.xlu0 %v638, 124
        %v735 = vpop.permute.xlu0 %734
        %736 = vrot.lane.b32.xlu0 %v639, 124
        %v737 = vpop.permute.xlu0 %736
        %v739 = vsel %vm214, %v731, 0
        %v742 = vsel %vm214, %v733, 0
        %v745 = vsel %vm214, %v735, 0
        %v748 = vsel %vm214, %v737, 0
        %v751 = vsel %vm227, %v729, 0
        %753 = vmatprep.subr.bf16.mxu0 0
        %754 = vmatpush1.bf16.msra.mxu0 %v751
        %755 = vmatprep.subr.bf16.mxu0 0
        %756 = vmatpush1.bf16.msra.mxu0 0
        %757 = vmatprep.subr.bf16.mxu0 0
        %758 = vmatpush1.bf16.msra.mxu0 0
        %759 = vmatprep.subr.bf16.mxu0 0
        %760 = vmatpush1.bf16.msra.mxu0 0
        %761 = vmatprep.subr.bf16.mxu0 0
        %762 = vmatpush1.bf16.msra.mxu0 0
        %763 = vmatprep.subr.bf16.mxu0 0
        %764 = vmatpush1.bf16.msra.mxu0 0
        %765 = vmatprep.subr.bf16.mxu0 0
        %766 = vmatpush1.bf16.msra.mxu0 0
        %767 = vmatprep.subr.bf16.mxu0 0
        %768 = vmatpush1.bf16.msra.mxu0 0
        %769 = vmatprep.subr.bf16.mxu0 0
        %770 = vmatpush1.bf16.msra.mxu0 0
        %771 = vmatprep.subr.bf16.mxu0 0
        %772 = vmatpush1.bf16.msra.mxu0 0
        %773 = vmatprep.subr.bf16.mxu0 0
        %774 = vmatpush1.bf16.msra.mxu0 0
        %775 = vmatprep.subr.bf16.mxu0 0
        %776 = vmatpush1.bf16.msra.mxu0 0
        %777 = vmatprep.subr.bf16.mxu0 0
        %778 = vmatpush1.bf16.msra.mxu0 0
        %779 = vmatprep.subr.bf16.mxu0 0
        %780 = vmatpush1.bf16.msra.mxu0 0
        %781 = vmatprep.subr.bf16.mxu0 0
        %782 = vmatpush1.bf16.msra.mxu0 0
        %783 = vmatprep.subr.bf16.mxu0 0
        %784 = vmatpush1.bf16.msra.mxu0 0
        %785 = vmatprep.mubr.bf16.mxu0 0
        %786 = vmatmul.mubr.bf16.gmra.mrb[0].mxu0 %v739
        %v787 = vpop.f32.mrb[0].mxu0
        %v788 = vadd.f32 0.0, %v787
        %v789 = vpop.f32.mrb[0].mxu0
        %v790 = vpop.f32.mrb[0].mxu0
        %v791 = vadd.f32 0.0, %v790
        %v792 = vpop.f32.mrb[0].mxu0
        %793 = vmatprep.mubr.bf16.mxu0 0
        %794 = vmatmul.mubr.bf16.gmra.mrb[0].mxu0 %v742
        %v795 = vpop.f32.mrb[0].mxu0
        %v796 = vadd.f32 0.0, %v795
        %v797 = vpop.f32.mrb[0].mxu0
        %v798 = vpop.f32.mrb[0].mxu0
        %v799 = vadd.f32 0.0, %v798
        %v800 = vpop.f32.mrb[0].mxu0
        %801 = vmatprep.mubr.bf16.mxu0 0
        %802 = vmatmul.mubr.bf16.gmra.mrb[0].mxu0 %v745
        %v803 = vpop.f32.mrb[0].mxu0
        %v804 = vadd.f32 0.0, %v803
        %v805 = vpop.f32.mrb[0].mxu0
        %v806 = vpop.f32.mrb[0].mxu0
        %v807 = vadd.f32 0.0, %v806
        %v808 = vpop.f32.mrb[0].mxu0
        %809 = vmatprep.mubr.bf16.mxu0 0
        %810 = vmatmul.mubr.bf16.gmra.mrb[0].mxu0 %v748
        %v811 = vpop.f32.mrb[0].mxu0
        %v812 = vadd.f32 0.0, %v811
        %v813 = vpop.f32.mrb[0].mxu0
        %v814 = vpop.f32.mrb[0].mxu0
        %v815 = vadd.f32 0.0, %v814
        %v816 = vpop.f32.mrb[0].mxu0
        %817 = vdwg.mxu0
        %v818 = vadd.f32 %v720, %v788
        %v819 = vadd.f32 %v721, %v791
        %v820 = vadd.f32 %v722, %v796
        %v821 = vadd.f32 %v723, %v799
        %v822 = vadd.f32 %v724, %v804
        %v823 = vadd.f32 %v725, %v807
        %v824 = vadd.f32 %v726, %v812
        %v825 = vadd.f32 %v727, %v815
        %v826 = vld [vmem:[%s609] sm:$0xf]
        %v827 = vld [vmem:[%s609 + $0x4] sm:$0x1]
        %v828 = vld [vmem:[%s609 + $0x10] sm:$0xf]
        %v829 = vld [vmem:[%s609 + $0x14] sm:$0x1]
        %v830 = vld [vmem:[%s609 + $0x20] sm:$0xf]
        %v831 = vld [vmem:[%s609 + $0x24] sm:$0x1]
        %v832 = vld [vmem:[%s609 + $0x30] sm:$0xf]
        %v833 = vld [vmem:[%s609 + $0x34] sm:$0x1]
        %v834 = vld [vmem:[%s609 + $0x40] sm:$0xf]
        %v835 = vld [vmem:[%s609 + $0x44] sm:$0x1]
        %v836 = vld [vmem:[%s609 + $0x50] sm:$0xf]
        %v837 = vld [vmem:[%s609 + $0x54] sm:$0x1]
        %v838 = vld [vmem:[%s609 + $0x60] sm:$0xf]
        %v839 = vld [vmem:[%s609 + $0x64] sm:$0x1]
        %v840 = vld [vmem:[%s609 + $0x70] sm:$0xf]
        %v841 = vld [vmem:[%s609 + $0x74] sm:$0x1]
        %v843 = vshrl.u32 %v826, 16
        %v845 = vrot.slane %v843, 4
        %v846 = vshll.u32 %v826, 16
        %v848 = vrot.slane %v846, 5
        %v849 = vor.u32 %v845, %v848
        %v850 = vrot.slane %v849, 4
        %v852 = vshll.u32 %v827, 16
        %v854 = vrot.slane %v852, 5
        %v855 = vsel %vm394, %v850, %v854
        %v857 = vshrl.u32 %v828, 16
        %v859 = vrot.slane %v857, 4
        %v860 = vshll.u32 %v828, 16
        %v862 = vrot.slane %v860, 5
        %v863 = vor.u32 %v859, %v862
        %v864 = vrot.slane %v863, 4
        %v866 = vshll.u32 %v829, 16
        %v868 = vrot.slane %v866, 5
        %v869 = vsel %vm394, %v864, %v868
        %v871 = vshrl.u32 %v830, 16
        %v873 = vrot.slane %v871, 4
        %v874 = vshll.u32 %v830, 16
        %v876 = vrot.slane %v874, 5
        %v877 = vor.u32 %v873, %v876
        %v878 = vrot.slane %v877, 4
        %v880 = vshll.u32 %v831, 16
        %v882 = vrot.slane %v880, 5
        %v883 = vsel %vm394, %v878, %v882
        %v885 = vshrl.u32 %v832, 16
        %v887 = vrot.slane %v885, 4
        %v888 = vshll.u32 %v832, 16
        %v890 = vrot.slane %v888, 5
        %v891 = vor.u32 %v887, %v890
        %v892 = vrot.slane %v891, 4
        %v894 = vshll.u32 %v833, 16
        %v896 = vrot.slane %v894, 5
        %v897 = vsel %vm394, %v892, %v896
        %v899 = vshrl.u32 %v834, 16
        %v901 = vrot.slane %v899, 4
        %v902 = vshll.u32 %v834, 16
        %v904 = vrot.slane %v902, 5
        %v905 = vor.u32 %v901, %v904
        %v906 = vrot.slane %v905, 4
        %v908 = vshll.u32 %v835, 16
        %v910 = vrot.slane %v908, 5
        %v911 = vsel %vm394, %v906, %v910
        %v913 = vshrl.u32 %v836, 16
        %v915 = vrot.slane %v913, 4
        %v916 = vshll.u32 %v836, 16
        %v918 = vrot.slane %v916, 5
        %v919 = vor.u32 %v915, %v918
        %v920 = vrot.slane %v919, 4
        %v922 = vshll.u32 %v837, 16
        %v924 = vrot.slane %v922, 5
        %v925 = vsel %vm394, %v920, %v924
        %v927 = vshrl.u32 %v838, 16
        %v929 = vrot.slane %v927, 4
        %v930 = vshll.u32 %v838, 16
        %v932 = vrot.slane %v930, 5
        %v933 = vor.u32 %v929, %v932
        %v934 = vrot.slane %v933, 4
        %v936 = vshll.u32 %v839, 16
        %v938 = vrot.slane %v936, 5
        %v939 = vsel %vm394, %v934, %v938
        %v941 = vshrl.u32 %v840, 16
        %v943 = vrot.slane %v941, 4
        %v944 = vshll.u32 %v840, 16
        %v946 = vrot.slane %v944, 5
        %v947 = vor.u32 %v943, %v946
        %v948 = vrot.slane %v947, 4
        %v950 = vshll.u32 %v841, 16
        %v952 = vrot.slane %v950, 5
        %v953 = vsel %vm394, %v948, %v952
        %s954 = scalar_lea.vmem %s1, 10
        %v955 = vld [vmem:[%s954] sm:$0x3]
        %v956 = vunpack.c.l.b16 %v855
        %v957 = vunpack.c.l.b16 %v869
        %v958 = vunpack.c.l.b16 %v883
        %v959 = vunpack.c.l.b16 %v897
        %v960 = vunpack.c.l.b16 %v911
        %v961 = vunpack.c.l.b16 %v925
        %v962 = vunpack.c.l.b16 %v939
        %v963 = vunpack.c.l.b16 %v953
        %v964 = vpack.c.b16 %v957, %v956
        %v965 = vpack.c.b16 %v959, %v958
        %v966 = vpack.c.b16 %v961, %v960
        %v967 = vpack.c.b16 %v963, %v962
        %v969 = vsel %vm214, %v964, 0
        %v972 = vsel %vm214, %v965, 0
        %v975 = vsel %vm214, %v966, 0
        %v978 = vsel %vm214, %v967, 0
        %v981 = vsel %vm227, %v955, 0
        %983 = vmatprep.subr.bf16.mxu0 0
        %984 = vmatpush1.bf16.msra.mxu0 %v981
        %985 = vmatprep.subr.bf16.mxu0 0
        %986 = vmatpush1.bf16.msra.mxu0 0
        %987 = vmatprep.subr.bf16.mxu0 0
        %988 = vmatpush1.bf16.msra.mxu0 0
        %989 = vmatprep.subr.bf16.mxu0 0
        %990 = vmatpush1.bf16.msra.mxu0 0
        %991 = vmatprep.subr.bf16.mxu0 0
        %992 = vmatpush1.bf16.msra.mxu0 0
        %993 = vmatprep.subr.bf16.mxu0 0
        %994 = vmatpush1.bf16.msra.mxu0 0
        %995 = vmatprep.subr.bf16.mxu0 0
        %996 = vmatpush1.bf16.msra.mxu0 0
        %997 = vmatprep.subr.bf16.mxu0 0
        %998 = vmatpush1.bf16.msra.mxu0 0
        %999 = vmatprep.subr.bf16.mxu0 0
        %1000 = vmatpush1.bf16.msra.mxu0 0
        %1001 = vmatprep.subr.bf16.mxu0 0
        %1002 = vmatpush1.bf16.msra.mxu0 0
        %1003 = vmatprep.subr.bf16.mxu0 0
        %1004 = vmatpush1.bf16.msra.mxu0 0
        %1005 = vmatprep.subr.bf16.mxu0 0
        %1006 = vmatpush1.bf16.msra.mxu0 0
        %1007 = vmatprep.subr.bf16.mxu0 0
        %1008 = vmatpush1.bf16.msra.mxu0 0
        %1009 = vmatprep.subr.bf16.mxu0 0
        %1010 = vmatpush1.bf16.msra.mxu0 0
        %1011 = vmatprep.subr.bf16.mxu0 0
        %1012 = vmatpush1.bf16.msra.mxu0 0
        %1013 = vmatprep.subr.bf16.mxu0 0
        %1014 = vmatpush1.bf16.msra.mxu0 0
        %1015 = vmatprep.mubr.bf16.mxu0 0
        %1016 = vmatmul.mubr.bf16.gmra.mrb[0].mxu0 %v969
        %v1017 = vpop.f32.mrb[0].mxu0
        %v1018 = vadd.f32 0.0, %v1017
        %v1019 = vpop.f32.mrb[0].mxu0
        %v1020 = vpop.f32.mrb[0].mxu0
        %v1021 = vadd.f32 0.0, %v1020
        %v1022 = vpop.f32.mrb[0].mxu0
        %1023 = vmatprep.mubr.bf16.mxu0 0
        %1024 = vmatmul.mubr.bf16.gmra.mrb[0].mxu0 %v972
        %v1025 = vpop.f32.mrb[0].mxu0
        %v1026 = vadd.f32 0.0, %v1025
        %v1027 = vpop.f32.mrb[0].mxu0
        %v1028 = vpop.f32.mrb[0].mxu0
        %v1029 = vadd.f32 0.0, %v1028
        %v1030 = vpop.f32.mrb[0].mxu0
        %1031 = vmatprep.mubr.bf16.mxu0 0
        %1032 = vmatmul.mubr.bf16.gmra.mrb[0].mxu0 %v975
        %v1033 = vpop.f32.mrb[0].mxu0
        %v1034 = vadd.f32 0.0, %v1033
        %v1035 = vpop.f32.mrb[0].mxu0
        %v1036 = vpop.f32.mrb[0].mxu0
        %v1037 = vadd.f32 0.0, %v1036
        %v1038 = vpop.f32.mrb[0].mxu0
        %1039 = vmatprep.mubr.bf16.mxu0 0
        %1040 = vmatmul.mubr.bf16.gmra.mrb[0].mxu0 %v978
        %v1041 = vpop.f32.mrb[0].mxu0
        %v1042 = vadd.f32 0.0, %v1041
        %v1043 = vpop.f32.mrb[0].mxu0
        %v1044 = vpop.f32.mrb[0].mxu0
        %v1045 = vadd.f32 0.0, %v1044
        %v1046 = vpop.f32.mrb[0].mxu0
        %1047 = vdwg.mxu0
        %v1048 = vadd.f32 %v818, %v1018
        %v1049 = vadd.f32 %v819, %v1021
        %v1050 = vadd.f32 %v820, %v1026
        %v1051 = vadd.f32 %v821, %v1029
        %v1052 = vadd.f32 %v822, %v1034
        %v1053 = vadd.f32 %v823, %v1037
        %v1054 = vadd.f32 %v824, %v1042
        %v1055 = vadd.f32 %v825, %v1045
        %s1056 = scalar_lea.vmem %s172, 16
        %v1057 = vld [vmem:[%s1056] sm:$0xf]
        %v1058 = vld [vmem:[%s1056 + $0x10] sm:$0xf]
        %v1059 = vld [vmem:[%s1056 + $0x20] sm:$0xf]
        %v1060 = vld [vmem:[%s1056 + $0x30] sm:$0xf]
        %v1061 = vld [vmem:[%s1056 + $0x40] sm:$0xf]
        %v1062 = vld [vmem:[%s1056 + $0x50] sm:$0xf]
        %v1063 = vld [vmem:[%s1056 + $0x60] sm:$0xf]
        %v1064 = vld [vmem:[%s1056 + $0x70] sm:$0xf]
        %s1065 = scalar_lea.vmem %s1, 12
        %v1066 = vld [vmem:[%s1065] sm:$0x3]
        %v1075 = vunpack.c.l.b16 %v1057
        %v1076 = vunpack.c.l.b16 %v1058
        %v1077 = vunpack.c.l.b16 %v1059
        %v1078 = vunpack.c.l.b16 %v1060
        %v1079 = vunpack.c.l.b16 %v1061
        %v1080 = vunpack.c.l.b16 %v1062
        %v1081 = vunpack.c.l.b16 %v1063
        %v1082 = vunpack.c.l.b16 %v1064
        %v1083 = vpack.c.b16 %v1076, %v1075
        %v1084 = vpack.c.b16 %v1078, %v1077
        %v1085 = vpack.c.b16 %v1080, %v1079
        %v1086 = vpack.c.b16 %v1082, %v1081
        %v1088 = vsel %vm214, %v1083, 0
        %v1091 = vsel %vm214, %v1084, 0
        %v1094 = vsel %vm214, %v1085, 0
        %v1097 = vsel %vm214, %v1086, 0
        %v1100 = vsel %vm227, %v1066, 0
        %1102 = vmatprep.subr.bf16.mxu0 0
        %1103 = vmatpush1.bf16.msra.mxu0 %v1100
        %1104 = vmatprep.subr.bf16.mxu0 0
        %1105 = vmatpush1.bf16.msra.mxu0 0
        %1106 = vmatprep.subr.bf16.mxu0 0
        %1107 = vmatpush1.bf16.msra.mxu0 0
        %1108 = vmatprep.subr.bf16.mxu0 0
        %1109 = vmatpush1.bf16.msra.mxu0 0
        %1110 = vmatprep.subr.bf16.mxu0 0
        %1111 = vmatpush1.bf16.msra.mxu0 0
        %1112 = vmatprep.subr.bf16.mxu0 0
        %1113 = vmatpush1.bf16.msra.mxu0 0
        %1114 = vmatprep.subr.bf16.mxu0 0
        %1115 = vmatpush1.bf16.msra.mxu0 0
        %1116 = vmatprep.subr.bf16.mxu0 0
        %1117 = vmatpush1.bf16.msra.mxu0 0
        %1118 = vmatprep.subr.bf16.mxu0 0
        %1119 = vmatpush1.bf16.msra.mxu0 0
        %1120 = vmatprep.subr.bf16.mxu0 0
        %1121 = vmatpush1.bf16.msra.mxu0 0
        %1122 = vmatprep.subr.bf16.mxu0 0
        %1123 = vmatpush1.bf16.msra.mxu0 0
        %1124 = vmatprep.subr.bf16.mxu0 0
        %1125 = vmatpush1.bf16.msra.mxu0 0
        %1126 = vmatprep.subr.bf16.mxu0 0
        %1127 = vmatpush1.bf16.msra.mxu0 0
        %1128 = vmatprep.subr.bf16.mxu0 0
        %1129 = vmatpush1.bf16.msra.mxu0 0
        %1130 = vmatprep.subr.bf16.mxu0 0
        %1131 = vmatpush1.bf16.msra.mxu0 0
        %1132 = vmatprep.subr.bf16.mxu0 0
        %1133 = vmatpush1.bf16.msra.mxu0 0
        %1134 = vmatprep.mubr.bf16.mxu0 0
        %1135 = vmatmul.mubr.bf16.gmra.mrb[0].mxu0 %v1088
        %v1136 = vpop.f32.mrb[0].mxu0
        %v1137 = vadd.f32 0.0, %v1136
        %v1138 = vpop.f32.mrb[0].mxu0
        %v1139 = vpop.f32.mrb[0].mxu0
        %v1140 = vadd.f32 0.0, %v1139
        %v1141 = vpop.f32.mrb[0].mxu0
        %1142 = vmatprep.mubr.bf16.mxu0 0
        %1143 = vmatmul.mubr.bf16.gmra.mrb[0].mxu0 %v1091
        %v1144 = vpop.f32.mrb[0].mxu0
        %v1145 = vadd.f32 0.0, %v1144
        %v1146 = vpop.f32.mrb[0].mxu0
        %v1147 = vpop.f32.mrb[0].mxu0
        %v1148 = vadd.f32 0.0, %v1147
        %v1149 = vpop.f32.mrb[0].mxu0
        %1150 = vmatprep.mubr.bf16.mxu0 0
        %1151 = vmatmul.mubr.bf16.gmra.mrb[0].mxu0 %v1094
        %v1152 = vpop.f32.mrb[0].mxu0
        %v1153 = vadd.f32 0.0, %v1152
        %v1154 = vpop.f32.mrb[0].mxu0
        %v1155 = vpop.f32.mrb[0].mxu0
        %v1156 = vadd.f32 0.0, %v1155
        %v1157 = vpop.f32.mrb[0].mxu0
        %1158 = vmatprep.mubr.bf16.mxu0 0
        %1159 = vmatmul.mubr.bf16.gmra.mrb[0].mxu0 %v1097
        %v1160 = vpop.f32.mrb[0].mxu0
        %v1161 = vadd.f32 0.0, %v1160
        %v1162 = vpop.f32.mrb[0].mxu0
        %v1163 = vpop.f32.mrb[0].mxu0
        %v1164 = vadd.f32 0.0, %v1163
        %v1165 = vpop.f32.mrb[0].mxu0
        %1166 = vdwg.mxu0
        %v1167 = vadd.f32 %v1048, %v1137
        %v1168 = vadd.f32 %v1049, %v1140
        %v1169 = vadd.f32 %v1050, %v1145
        %v1170 = vadd.f32 %v1051, %v1148
        %v1171 = vadd.f32 %v1052, %v1153
        %v1172 = vadd.f32 %v1053, %v1156
        %v1173 = vadd.f32 %v1054, %v1161
        %v1174 = vadd.f32 %v1055, %v1164
        %s1175 = scalar_lea.vmem %s1, 14
        %v1176 = vld [vmem:[%s1175] sm:$0x3]
        %1177 = vrot.lane.b32.xlu0 %v1083, 124
        %v1178 = vpop.permute.xlu0 %1177
        %1179 = vrot.lane.b32.xlu0 %v1084, 124
        %v1180 = vpop.permute.xlu0 %1179
        %1181 = vrot.lane.b32.xlu0 %v1085, 124
        %v1182 = vpop.permute.xlu0 %1181
        %1183 = vrot.lane.b32.xlu0 %v1086, 124
        %v1184 = vpop.permute.xlu0 %1183
        %v1186 = vsel %vm214, %v1178, 0
        %v1189 = vsel %vm214, %v1180, 0
        %v1192 = vsel %vm214, %v1182, 0
        %v1195 = vsel %vm214, %v1184, 0
        %v1198 = vsel %vm227, %v1176, 0
        %1200 = vmatprep.subr.bf16.mxu0 0
        %1201 = vmatpush1.bf16.msra.mxu0 %v1198
        %1202 = vmatprep.subr.bf16.mxu0 0
        %1203 = vmatpush1.bf16.msra.mxu0 0
        %1204 = vmatprep.subr.bf16.mxu0 0
        %1205 = vmatpush1.bf16.msra.mxu0 0
        %1206 = vmatprep.subr.bf16.mxu0 0
        %1207 = vmatpush1.bf16.msra.mxu0 0
        %1208 = vmatprep.subr.bf16.mxu0 0
        %1209 = vmatpush1.bf16.msra.mxu0 0
        %1210 = vmatprep.subr.bf16.mxu0 0
        %1211 = vmatpush1.bf16.msra.mxu0 0
        %1212 = vmatprep.subr.bf16.mxu0 0
        %1213 = vmatpush1.bf16.msra.mxu0 0
        %1214 = vmatprep.subr.bf16.mxu0 0
        %1215 = vmatpush1.bf16.msra.mxu0 0
        %1216 = vmatprep.subr.bf16.mxu0 0
        %1217 = vmatpush1.bf16.msra.mxu0 0
        %1218 = vmatprep.subr.bf16.mxu0 0
        %1219 = vmatpush1.bf16.msra.mxu0 0
        %1220 = vmatprep.subr.bf16.mxu0 0
        %1221 = vmatpush1.bf16.msra.mxu0 0
        %1222 = vmatprep.subr.bf16.mxu0 0
        %1223 = vmatpush1.bf16.msra.mxu0 0
        %1224 = vmatprep.subr.bf16.mxu0 0
        %1225 = vmatpush1.bf16.msra.mxu0 0
        %1226 = vmatprep.subr.bf16.mxu0 0
        %1227 = vmatpush1.bf16.msra.mxu0 0
        %1228 = vmatprep.subr.bf16.mxu0 0
        %1229 = vmatpush1.bf16.msra.mxu0 0
        %1230 = vmatprep.subr.bf16.mxu0 0
        %1231 = vmatpush1.bf16.msra.mxu0 0
        %1232 = vmatprep.mubr.bf16.mxu0 0
        %1233 = vmatmul.mubr.bf16.gmra.mrb[0].mxu0 %v1186
        %v1234 = vpop.f32.mrb[0].mxu0
        %v1235 = vadd.f32 0.0, %v1234
        %v1236 = vpop.f32.mrb[0].mxu0
        %v1237 = vpop.f32.mrb[0].mxu0
        %v1238 = vadd.f32 0.0, %v1237
        %v1239 = vpop.f32.mrb[0].mxu0
        %1240 = vmatprep.mubr.bf16.mxu0 0
        %1241 = vmatmul.mubr.bf16.gmra.mrb[0].mxu0 %v1189
        %v1242 = vpop.f32.mrb[0].mxu0
        %v1243 = vadd.f32 0.0, %v1242
        %v1244 = vpop.f32.mrb[0].mxu0
        %v1245 = vpop.f32.mrb[0].mxu0
        %v1246 = vadd.f32 0.0, %v1245
        %v1247 = vpop.f32.mrb[0].mxu0
        %1248 = vmatprep.mubr.bf16.mxu0 0
        %1249 = vmatmul.mubr.bf16.gmra.mrb[0].mxu0 %v1192
        %v1250 = vpop.f32.mrb[0].mxu0
        %v1251 = vadd.f32 0.0, %v1250
        %v1252 = vpop.f32.mrb[0].mxu0
        %v1253 = vpop.f32.mrb[0].mxu0
        %v1254 = vadd.f32 0.0, %v1253
        %v1255 = vpop.f32.mrb[0].mxu0
        %1256 = vmatprep.mubr.bf16.mxu0 0
        %1257 = vmatmul.mubr.bf16.gmra.mrb[0].mxu0 %v1195
        %v1258 = vpop.f32.mrb[0].mxu0
        %v1259 = vadd.f32 0.0, %v1258
        %v1260 = vpop.f32.mrb[0].mxu0
        %v1261 = vpop.f32.mrb[0].mxu0
        %v1262 = vadd.f32 0.0, %v1261
        %v1263 = vpop.f32.mrb[0].mxu0
        %1264 = vdwg.mxu0
        %v1265 = vadd.f32 %v1167, %v1235
        %v1266 = vadd.f32 %v1168, %v1238
        %v1267 = vadd.f32 %v1169, %v1243
        %v1268 = vadd.f32 %v1170, %v1246
        %v1269 = vadd.f32 %v1171, %v1251
        %v1270 = vadd.f32 %v1172, %v1254
        %v1271 = vadd.f32 %v1173, %v1259
        %v1272 = vadd.f32 %v1174, %v1262
        %v1273 = vld [vmem:[%s1056] sm:$0xf]
        %v1274 = vld [vmem:[%s1056 + $0x4] sm:$0x1]
        %v1275 = vld [vmem:[%s1056 + $0x10] sm:$0xf]
        %v1276 = vld [vmem:[%s1056 + $0x14] sm:$0x1]
        %v1277 = vld [vmem:[%s1056 + $0x20] sm:$0xf]
        %v1278 = vld [vmem:[%s1056 + $0x24] sm:$0x1]
        %v1279 = vld [vmem:[%s1056 + $0x30] sm:$0xf]
        %v1280 = vld [vmem:[%s1056 + $0x34] sm:$0x1]
        %v1281 = vld [vmem:[%s1056 + $0x40] sm:$0xf]
        %v1282 = vld [vmem:[%s1056 + $0x44] sm:$0x1]
        %v1283 = vld [vmem:[%s1056 + $0x50] sm:$0xf]
        %v1284 = vld [vmem:[%s1056 + $0x54] sm:$0x1]
        %v1285 = vld [vmem:[%s1056 + $0x60] sm:$0xf]
        %v1286 = vld [vmem:[%s1056 + $0x64] sm:$0x1]
        %v1287 = vld [vmem:[%s1056 + $0x70] sm:$0xf]
        %v1288 = vld [vmem:[%s1056 + $0x74] sm:$0x1]
        %v1290 = vshrl.u32 %v1273, 16
        %v1292 = vrot.slane %v1290, 4
        %v1293 = vshll.u32 %v1273, 16
        %v1295 = vrot.slane %v1293, 5
        %v1296 = vor.u32 %v1292, %v1295
        %v1297 = vrot.slane %v1296, 4
        %v1299 = vshll.u32 %v1274, 16
        %v1301 = vrot.slane %v1299, 5
        %v1302 = vsel %vm394, %v1297, %v1301
        %v1304 = vshrl.u32 %v1275, 16
        %v1306 = vrot.slane %v1304, 4
        %v1307 = vshll.u32 %v1275, 16
        %v1309 = vrot.slane %v1307, 5
        %v1310 = vor.u32 %v1306, %v1309
        %v1311 = vrot.slane %v1310, 4
        %v1313 = vshll.u32 %v1276, 16
        %v1315 = vrot.slane %v1313, 5
        %v1316 = vsel %vm394, %v1311, %v1315
        %v1318 = vshrl.u32 %v1277, 16
        %v1320 = vrot.slane %v1318, 4
        %v1321 = vshll.u32 %v1277, 16
        %v1323 = vrot.slane %v1321, 5
        %v1324 = vor.u32 %v1320, %v1323
        %v1325 = vrot.slane %v1324, 4
        %v1327 = vshll.u32 %v1278, 16
        %v1329 = vrot.slane %v1327, 5
        %v1330 = vsel %vm394, %v1325, %v1329
        %v1332 = vshrl.u32 %v1279, 16
        %v1334 = vrot.slane %v1332, 4
        %v1335 = vshll.u32 %v1279, 16
        %v1337 = vrot.slane %v1335, 5
        %v1338 = vor.u32 %v1334, %v1337
        %v1339 = vrot.slane %v1338, 4
        %v1341 = vshll.u32 %v1280, 16
        %v1343 = vrot.slane %v1341, 5
        %v1344 = vsel %vm394, %v1339, %v1343
        %v1346 = vshrl.u32 %v1281, 16
        %v1348 = vrot.slane %v1346, 4
        %v1349 = vshll.u32 %v1281, 16
        %v1351 = vrot.slane %v1349, 5
        %v1352 = vor.u32 %v1348, %v1351
        %v1353 = vrot.slane %v1352, 4
        %v1355 = vshll.u32 %v1282, 16
        %v1357 = vrot.slane %v1355, 5
        %v1358 = vsel %vm394, %v1353, %v1357
        %v1360 = vshrl.u32 %v1283, 16
        %v1362 = vrot.slane %v1360, 4
        %v1363 = vshll.u32 %v1283, 16
        %v1365 = vrot.slane %v1363, 5
        %v1366 = vor.u32 %v1362, %v1365
        %v1367 = vrot.slane %v1366, 4
        %v1369 = vshll.u32 %v1284, 16
        %v1371 = vrot.slane %v1369, 5
        %v1372 = vsel %vm394, %v1367, %v1371
        %v1374 = vshrl.u32 %v1285, 16
        %v1376 = vrot.slane %v1374, 4
        %v1377 = vshll.u32 %v1285, 16
        %v1379 = vrot.slane %v1377, 5
        %v1380 = vor.u32 %v1376, %v1379
        %v1381 = vrot.slane %v1380, 4
        %v1383 = vshll.u32 %v1286, 16
        %v1385 = vrot.slane %v1383, 5
        %v1386 = vsel %vm394, %v1381, %v1385
        %v1388 = vshrl.u32 %v1287, 16
        %v1390 = vrot.slane %v1388, 4
        %v1391 = vshll.u32 %v1287, 16
        %v1393 = vrot.slane %v1391, 5
        %v1394 = vor.u32 %v1390, %v1393
        %v1395 = vrot.slane %v1394, 4
        %v1397 = vshll.u32 %v1288, 16
        %v1399 = vrot.slane %v1397, 5
        %v1400 = vsel %vm394, %v1395, %v1399
        %s1401 = scalar_lea.vmem %s1, 16
        %v1402 = vld [vmem:[%s1401] sm:$0x3]
        %v1403 = vunpack.c.l.b16 %v1302
        %v1404 = vunpack.c.l.b16 %v1316
        %v1405 = vunpack.c.l.b16 %v1330
        %v1406 = vunpack.c.l.b16 %v1344
        %v1407 = vunpack.c.l.b16 %v1358
        %v1408 = vunpack.c.l.b16 %v1372
        %v1409 = vunpack.c.l.b16 %v1386
        %v1410 = vunpack.c.l.b16 %v1400
        %v1411 = vpack.c.b16 %v1404, %v1403
        %v1412 = vpack.c.b16 %v1406, %v1405
        %v1413 = vpack.c.b16 %v1408, %v1407
        %v1414 = vpack.c.b16 %v1410, %v1409
        %v1416 = vsel %vm214, %v1411, 0
        %v1419 = vsel %vm214, %v1412, 0
        %v1422 = vsel %vm214, %v1413, 0
        %v1425 = vsel %vm214, %v1414, 0
        %v1428 = vsel %vm227, %v1402, 0
        %1430 = vmatprep.subr.bf16.mxu0 0
        %1431 = vmatpush1.bf16.msra.mxu0 %v1428
        %1432 = vmatprep.subr.bf16.mxu0 0
        %1433 = vmatpush1.bf16.msra.mxu0 0
        %1434 = vmatprep.subr.bf16.mxu0 0
        %1435 = vmatpush1.bf16.msra.mxu0 0
        %1436 = vmatprep.subr.bf16.mxu0 0
        %1437 = vmatpush1.bf16.msra.mxu0 0
        %1438 = vmatprep.subr.bf16.mxu0 0
        %1439 = vmatpush1.bf16.msra.mxu0 0
        %1440 = vmatprep.subr.bf16.mxu0 0
        %1441 = vmatpush1.bf16.msra.mxu0 0
        %1442 = vmatprep.subr.bf16.mxu0 0
        %1443 = vmatpush1.bf16.msra.mxu0 0
        %1444 = vmatprep.subr.bf16.mxu0 0
        %1445 = vmatpush1.bf16.msra.mxu0 0
        %1446 = vmatprep.subr.bf16.mxu0 0
        %1447 = vmatpush1.bf16.msra.mxu0 0
        %1448 = vmatprep.subr.bf16.mxu0 0
        %1449 = vmatpush1.bf16.msra.mxu0 0
        %1450 = vmatprep.subr.bf16.mxu0 0
        %1451 = vmatpush1.bf16.msra.mxu0 0
        %1452 = vmatprep.subr.bf16.mxu0 0
        %1453 = vmatpush1.bf16.msra.mxu0 0
        %1454 = vmatprep.subr.bf16.mxu0 0
        %1455 = vmatpush1.bf16.msra.mxu0 0
        %1456 = vmatprep.subr.bf16.mxu0 0
        %1457 = vmatpush1.bf16.msra.mxu0 0
        %1458 = vmatprep.subr.bf16.mxu0 0
        %1459 = vmatpush1.bf16.msra.mxu0 0
        %1460 = vmatprep.subr.bf16.mxu0 0
        %1461 = vmatpush1.bf16.msra.mxu0 0
        %1462 = vmatprep.mubr.bf16.mxu0 0
        %1463 = vmatmul.mubr.bf16.gmra.mrb[0].mxu0 %v1416
        %v1464 = vpop.f32.mrb[0].mxu0
        %v1465 = vadd.f32 0.0, %v1464
        %v1466 = vpop.f32.mrb[0].mxu0
        %v1467 = vpop.f32.mrb[0].mxu0
        %v1468 = vadd.f32 0.0, %v1467
        %v1469 = vpop.f32.mrb[0].mxu0
        %1470 = vmatprep.mubr.bf16.mxu0 0
        %1471 = vmatmul.mubr.bf16.gmra.mrb[0].mxu0 %v1419
        %v1472 = vpop.f32.mrb[0].mxu0
        %v1473 = vadd.f32 0.0, %v1472
        %v1474 = vpop.f32.mrb[0].mxu0
        %v1475 = vpop.f32.mrb[0].mxu0
        %v1476 = vadd.f32 0.0, %v1475
        %v1477 = vpop.f32.mrb[0].mxu0
        %1478 = vmatprep.mubr.bf16.mxu0 0
        %1479 = vmatmul.mubr.bf16.gmra.mrb[0].mxu0 %v1422
        %v1480 = vpop.f32.mrb[0].mxu0
        %v1481 = vadd.f32 0.0, %v1480
        %v1482 = vpop.f32.mrb[0].mxu0
        %v1483 = vpop.f32.mrb[0].mxu0
        %v1484 = vadd.f32 0.0, %v1483
        %v1485 = vpop.f32.mrb[0].mxu0
        %1486 = vmatprep.mubr.bf16.mxu0 0
        %1487 = vmatmul.mubr.bf16.gmra.mrb[0].mxu0 %v1425
        %v1488 = vpop.f32.mrb[0].mxu0
        %v1489 = vadd.f32 0.0, %v1488
        %v1490 = vpop.f32.mrb[0].mxu0
        %v1491 = vpop.f32.mrb[0].mxu0
        %v1492 = vadd.f32 0.0, %v1491
        %v1493 = vpop.f32.mrb[0].mxu0
        %1494 = vdwg.mxu0
        %v1495 = vadd.f32 %v1265, %v1465
        %v1496 = vadd.f32 %v1266, %v1468
        %v1497 = vadd.f32 %v1267, %v1473
        %v1498 = vadd.f32 %v1268, %v1476
        %v1499 = vadd.f32 %v1269, %v1481
        %v1500 = vadd.f32 %v1270, %v1484
        %v1501 = vadd.f32 %v1271, %v1489
        %v1502 = vadd.f32 %v1272, %v1492
        %v1503 = vld [vmem:[%s2] sm:$0x1]
        %v1505 = vlaneseq
        %v1506 = vshrl.u32 %v1505, 7
        %v1507 = vsub.s32 0, %v1506
        %v1508 = vrot.slane %v1503, %v1507
        %v1510 = vadd.f32 %v1495, %v1508
        %v1511 = vadd.f32 %v1496, %v1508
        %v1512 = vadd.f32 %v1497, %v1508
        %v1513 = vadd.f32 %v1498, %v1508
        %v1514 = vadd.f32 %v1499, %v1508
        %v1515 = vadd.f32 %v1500, %v1508
        %v1516 = vadd.f32 %v1501, %v1508
        %v1517 = vadd.f32 %v1502, %v1508
        %1518 = vst [vmem:[%s166] sm:$0xff] %v1510
        %1519 = vst [vmem:[%s166 + $0x8] sm:$0xff] %v1511
        %1520 = vst [vmem:[%s166 + $0x10] sm:$0xff] %v1512
        %1521 = vst [vmem:[%s166 + $0x18] sm:$0xff] %v1513
        %1522 = vst [vmem:[%s166 + $0x20] sm:$0xff] %v1514
        %1523 = vst [vmem:[%s166 + $0x28] sm:$0xff] %v1515
        %1524 = vst [vmem:[%s166 + $0x30] sm:$0xff] %v1516
        %1525 = vst [vmem:[%s166 + $0x38] sm:$0xff] %v1517
        %s1526 = sand.u32 %s93, 1
        %s1527 = scalar_lea.sflag [#allocation3], %s1526
        %s1528 = sand.u32 %s93, 1
        %s1529 = smul.addr %s1528, 64
        %s1530 = scalar_lea.vmem [#allocation2], %s1529
        // Predicated region
        $region33: #{tpu_custom_call.1} parent=31 // pred_check
          %p1531 = pneg %p103
        $region34: #{tpu_custom_call.1} parent=31 // pred_check_branch
          %1533 = sbr.rel (%p1531) target = $region36
        $region35: #{tpu_custom_call.1} parent=31 // pred_region
          %s1535 = ssub.s32 1024, 1024
          %1536 = vsyncadd %s1527, %s1535
          %s1537 = smul.addr %s17, 8
          %s1538 = smul.addr %s1537, 128
          %s1539 = scalar_lea.hbm %s3, %s1538
          %s1540 = sshll.u32 %s1530, 4
          %s1541 = int_to_ptr.vmem [resolvable:$true] %s1540
          %1546 = dma.vmem_to_hbm [thread:$0]  %s1541, 1024, %s1539, %s1527, 128, 128, 8
        $region36: #{tpu_custom_call.1} parent=31 // pred_fallthru
          _
      $region32: #{tpu_custom_call.1} parent=5 // pred_fallthru
        _
      %p1547 = scmp.le.s32.totalorder 2, %s12
      // Predicated region
      $region37: #{tpu_custom_call.1} parent=5 // pred_check
        %p1548 = pneg %p1547
      $region38: #{tpu_custom_call.1} parent=5 // pred_check_branch
        %1550 = sbr.rel (%p1548) target = $region40
      $region39: #{tpu_custom_call.1} parent=5 // pred_region
        %s1551 = ssub.s32 %s12, 2
        // Predicated region
        $region41: #{tpu_custom_call.1} parent=39 // pred_check
          %p1552 = pneg %p109
        $region42: #{tpu_custom_call.1} parent=39 // pred_check_branch
          %1554 = sbr.rel (%p1552) target = $region44
        $region43: #{tpu_custom_call.1} parent=39 // pred_region
          %s1555 = sand.u32 %s94, 1
          %s1556 = scalar_lea.sflag [#allocation3], %s1555
          %s1557 = sand.u32 %s94, 1
          %s1558 = smul.addr %s1557, 64
          %s1559 = scalar_lea.vmem [#allocation2], %s1558
          %1560 = dma.done %s1556, 1024
        $region44: #{tpu_custom_call.1} parent=39 // pred_fallthru
          _
      $region40: #{tpu_custom_call.1} parent=5 // pred_fallthru
        _
    $region6: #{tpu_custom_call.1} parent=1 // loop_footer
      %s16 = sadd.s32 1, %s12
    $region7: #{tpu_custom_call.1} parent=1 // loop_footer_branch
      %11 = sbr.rel target = $region3
    $region8: #{tpu_custom_call.1} parent=1 // loop_exit
      _
    %1561 = vsyncpa [#allocation3], 1
    %s1562 = scalar_lea.sflag [#allocation3], 1
    %1563 = vsyncpa %s1562, 1

</llo_original>
